<compile_context>
chip_gen: v5e
topology: v5e:2x2
jax: 0.10.0
libtpu: 0.0.40
codegen_flags: <defaults>
</compile_context>

<pallas_src>
import math
import functools
import jax
import jax.numpy as jnp
from jax.experimental import pallas as pl
from jax.experimental.pallas import tpu as pltpu


def _layer_norm(z, g, b, eps=1e-5):
    """PyTorch-style LayerNorm over the last axis (biased variance, eps=1e-5)."""
    mean = jnp.mean(z, axis=-1, keepdims=True)
    var = jnp.mean(jnp.square(z - mean), axis=-1, keepdims=True)
    return (z - mean) * jax.lax.rsqrt(var + eps) * g + b


# ---------------------------------------------------------------------------
# Fused encoder block kernel:
#   QKV proj -> multi-head attention -> out proj -> AddNorm -> FFN -> AddNorm
# One pallas_call per block, grid over batch ("parallel").
# ---------------------------------------------------------------------------
def _make_encoder_block_kernel(num_heads, seq_len, hidden, use_mask):
    Dh = hidden // num_heads
    scale = 1.0 / math.sqrt(Dh)

    def kernel(*refs):
        if use_mask:
            (vl_ref, x_ref, wqkv_ref, bqkv_ref, wo_ref, bo_ref,
             ln1g_ref, ln1b_ref, w1_ref, b1_ref, w2_ref, b2_ref,
             ln2g_ref, ln2b_ref, o_ref) = refs
        else:
            (x_ref, wqkv_ref, bqkv_ref, wo_ref, bo_ref,
             ln1g_ref, ln1b_ref, w1_ref, b1_ref, w2_ref, b2_ref,
             ln2g_ref, ln2b_ref, o_ref) = refs

        x = x_ref[0]                                        # (S, H) bf16
        # ---- fused QKV projection: single (H, 3H) MXU matmul ----
        qkv = jnp.dot(x, wqkv_ref[...],
                      preferred_element_type=jnp.float32) + bqkv_ref[...]

        if use_mask:
            vl = vl_ref[pl.program_id(0)]                   # SMEM scalar
            key_idx = jax.lax.broadcasted_iota(jnp.int32,
                                               (seq_len, seq_len), 1)

        # ---- multi-head scaled dot-product attention (heads unrolled) ----
        head_outs = []
        for h in range(num_heads):
            # fold 1/sqrt(Dh) into q (S*Dh muls instead of S*S)
            q = (qkv[:, h * Dh:(h + 1) * Dh] * scale).astype(jnp.bfloat16)
            k = qkv[:, hidden + h * Dh: hidden + (h + 1) * Dh].astype(jnp.bfloat16)
            v = qkv[:, 2 * hidden + h * Dh: 2 * hidden + (h + 1) * Dh].astype(jnp.bfloat16)
            s = jnp.einsum('qd,kd->qk', q, k,
                           preferred_element_type=jnp.float32)   # (S, S) f32
            if use_mask:
                s = jnp.where(key_idx < vl, s, -1e6)        # d2l masked_softmax
            m = jnp.max(s, axis=-1, keepdims=True)
            p = jnp.exp(s - m)
            p = p * pl.reciprocal(jnp.sum(p, axis=-1, keepdims=True),
                                  approx=True)
            head_outs.append(jnp.dot(p.astype(jnp.bfloat16), v,
                                     preferred_element_type=jnp.float32))
        att = jnp.concatenate(head_outs, axis=-1)           # (S, H) f32

        # ---- output projection (+bias) ----
        att = jnp.dot(att.astype(jnp.bfloat16), wo_ref[...],
                      preferred_element_type=jnp.float32) + bo_ref[...]
        # ---- AddNorm 1 (dropout p=0 -> identity), f32 stats ----
        y = _layer_norm(x.astype(jnp.float32) + att, ln1g_ref[...], ln1b_ref[...])
        # ---- position-wise FFN (ReLU fused) ----
        hdn = jnp.dot(y.astype(jnp.bfloat16), w1_ref[...],
                      preferred_element_type=jnp.float32) + b1_ref[...]
        hdn = jnp.maximum(hdn, 0.0)
        ffn = jnp.dot(hdn.astype(jnp.bfloat16), w2_ref[...],
                      preferred_element_type=jnp.float32) + b2_ref[...]
        # ---- AddNorm 2 ----
        o_ref[0] = _layer_norm(y + ffn, ln2g_ref[...],
                               ln2b_ref[...]).astype(o_ref.dtype)

    return kernel


def pallas_encoder_block(X, p, num_heads, valid_lens):
    """X: (B, S, H) bf16 -> (B, S, H) bf16; whole encoder block, one call."""
    B, S, H = X.shape
    F = p['W1'].shape[1]
    use_mask = valid_lens is not None

    def amap(b, *_):
        return (b, 0, 0)

    def wmap(b, *_):
        return (0, 0)

    in_specs = [
        pl.BlockSpec((1, S, H), amap),        # X
        pl.BlockSpec((H, 3 * H), wmap),       # Wqkv
        pl.BlockSpec((1, 3 * H), wmap),       # bqkv
        pl.BlockSpec((H, H), wmap),           # Wo
        pl.BlockSpec((1, H), wmap),           # bo
        pl.BlockSpec((1, H), wmap),           # ln1 gamma
        pl.BlockSpec((1, H), wmap),           # ln1 beta
        pl.BlockSpec((H, F), wmap),           # W1
        pl.BlockSpec((1, F), wmap),           # b1
        pl.BlockSpec((F, H), wmap),           # W2
        pl.BlockSpec((1, H), wmap),           # b2
        pl.BlockSpec((1, H), wmap),           # ln2 gamma
        pl.BlockSpec((1, H), wmap),           # ln2 beta
    ]
    operands = (
        X.astype(jnp.bfloat16),
        p['Wqkv'].astype(jnp.bfloat16),
        p['bqkv'].reshape(1, 3 * H).astype(jnp.float32),
        p['Wo'].astype(jnp.bfloat16),
        p['bo'].reshape(1, H).astype(jnp.float32),
        p['ln1_g'].reshape(1, H).astype(jnp.float32),
        p['ln1_b'].reshape(1, H).astype(jnp.float32),
        p['W1'].astype(jnp.bfloat16),
        p['b1'].reshape(1, F).astype(jnp.float32),
        p['W2'].astype(jnp.bfloat16),
        p['b2'].reshape(1, H).astype(jnp.float32),
        p['ln2_g'].reshape(1, H).astype(jnp.float32),
        p['ln2_b'].reshape(1, H).astype(jnp.float32),
    )

    prefetch = ()
    nsp = 0
    if use_mask:
        prefetch = (valid_lens.astype(jnp.int32),)
        nsp = 1

    return pl.pallas_call(
        _make_encoder_block_kernel(num_heads, S, H, use_mask),
        grid_spec=pltpu.PrefetchScalarGridSpec(
            num_scalar_prefetch=nsp,
            grid=(B,),
            in_specs=in_specs,
            out_specs=pl.BlockSpec((1, S, H), amap),
        ),
        out_shape=jax.ShapeDtypeStruct((B, S, H), jnp.bfloat16),
        compiler_params=pltpu.CompilerParams(
            dimension_semantics=("parallel",)),
    )(*prefetch, *operands)


# ---------------------------------------------------------------------------
# Fused MLM head: Linear + ReLU + LayerNorm + Linear (lane-dense vocab output)
# ---------------------------------------------------------------------------
def _mlm_kernel(x_ref, w1_ref, b1_ref, g_ref, bn_ref, w2_ref, b2_ref, o_ref):
    x = x_ref[...]                                         # (M, H) bf16
    h = jnp.dot(x, w1_ref[...], preferred_element_type=jnp.float32) + b1_ref[...]
    h = jnp.maximum(h, 0.0)
    h = _layer_norm(h, g_ref[...], bn_ref[...])            # plain LN, no residual
    o_ref[...] = (jnp.dot(h.astype(jnp.bfloat16), w2_ref[...],
                          preferred_element_type=jnp.float32) + b2_ref[...])


def pallas_mask_lm(masked_X, p):
    M, H = masked_X.shape
    V = p['W2'].shape[1]
    return pl.pallas_call(
        _mlm_kernel,
        grid=(1,),
        in_specs=[pl.BlockSpec((M, H), lambda i: (0, 0)),
                  pl.BlockSpec((H, H), lambda i: (0, 0)),
                  pl.BlockSpec((1, H), lambda i: (0, 0)),
                  pl.BlockSpec((1, H), lambda i: (0, 0)),
                  pl.BlockSpec((1, H), lambda i: (0, 0)),
                  pl.BlockSpec((H, V), lambda i: (0, 0)),
                  pl.BlockSpec((1, V), lambda i: (0, 0))],
        out_specs=pl.BlockSpec((M, V), lambda i: (0, 0)),
        out_shape=jax.ShapeDtypeStruct((M, V), jnp.float32),
    )(masked_X.astype(jnp.bfloat16),
      p['W1'].astype(jnp.bfloat16), p['b1'].reshape(1, H).astype(jnp.float32),
      p['ln_g'].reshape(1, H).astype(jnp.float32),
      p['ln_b'].reshape(1, H).astype(jnp.float32),
      p['W2'].astype(jnp.bfloat16), p['b2'].reshape(1, V).astype(jnp.float32))


# ---------------------------------------------------------------------------
# Fused pooler (Linear + tanh) + NSP head (Linear)
# ---------------------------------------------------------------------------
def _pooler_nsp_kernel(x_ref, wh_ref, bh_ref, wn_ref, bn_ref, o_ref):
    x = x_ref[...]                                         # (B, H) bf16
    h = jnp.tanh(jnp.dot(x, wh_ref[...],
                         preferred_element_type=jnp.float32) + bh_ref[...])
    o_ref[...] = (jnp.dot(h.astype(jnp.bfloat16), wn_ref[...],
                          preferred_element_type=jnp.float32) + bn_ref[...])


def pallas_pooler_nsp(x_cls, ph, pn):
    B, H = x_cls.shape
    N = pn['W'].shape[1]
    return pl.pallas_call(
        _pooler_nsp_kernel,
        grid=(1,),
        in_specs=[pl.BlockSpec((B, H), lambda i: (0, 0)),
                  pl.BlockSpec((H, H), lambda i: (0, 0)),
                  pl.BlockSpec((1, H), lambda i: (0, 0)),
                  pl.BlockSpec((H, N), lambda i: (0, 0)),
                  pl.BlockSpec((1, N), lambda i: (0, 0))],
        out_specs=pl.BlockSpec((B, N), lambda i: (0, 0)),
        out_shape=jax.ShapeDtypeStruct((B, N), jnp.float32),
    )(x_cls.astype(jnp.bfloat16),
      ph['W'].astype(jnp.bfloat16), ph['b'].reshape(1, H).astype(jnp.float32),
      pn['W'].astype(jnp.bfloat16), pn['b'].reshape(1, N).astype(jnp.float32))


# ---------------------------------------------------------------------------
# Model glue (embedding lookups / gathers / bookkeeping in plain JAX)
# ---------------------------------------------------------------------------
@functools.partial(jax.jit, static_argnames=("num_heads",))
def bert_model_forward(params, tokens, segments, valid_lens=None,
                       pred_positions=None, num_heads=4):
    enc = params['encoder']
    X = enc['tok_emb'][tokens] + enc['seg_emb'][segments]      # embedding gathers
    X = X + enc['pos_emb'][:, :tokens.shape[1], :]
    X = X.astype(jnp.bfloat16)
    for blk in enc['blocks']:
        X = pallas_encoder_block(X, blk, num_heads, valid_lens)
    encoded_X = X

    if pred_positions is not None:
        B, n_pred = pred_positions.shape
        batch_idx = jnp.repeat(jnp.arange(B), n_pred)
        masked_X = encoded_X[batch_idx, pred_positions.reshape(-1)]  # gather glue
        mlm_Y_hat = pallas_mask_lm(masked_X, params['mlm'])
        mlm_Y_hat = mlm_Y_hat.reshape(B, n_pred, -1)
    else:
        mlm_Y_hat = None

    nsp_Y_hat = pallas_pooler_nsp(encoded_X[:, 0, :],
                                  params['hidden'], params['nsp'])
    return encoded_X.astype(jnp.float32), mlm_Y_hat, nsp_Y_hat


# ---------------------------------------------------------------------------
# Deterministic parameter initialization (QKV weights stored pre-fused)
# ---------------------------------------------------------------------------
def init_params(key, vocab_size, num_hiddens, ffn_num_hiddens, num_layers,
                max_len):
    H = num_hiddens

    def nrm(k, shape, scale=0.02):
        return jax.random.normal(k, shape, dtype=jnp.float32) * scale

    keys = jax.random.split(key, 4 + num_layers)
    enc = {
        'tok_emb': nrm(keys[0], (vocab_size, H)),
        'seg_emb': nrm(keys[1], (2, H)),
        'pos_emb': nrm(keys[2], (1, max_len, H), scale=1.0),
        'blocks': [],
    }
    for li in range(num_layers):
        bk = jax.random.split(keys[3 + li], 4)
        enc['blocks'].append({
            'Wqkv': nrm(bk[0], (H, 3 * H)),      # fused [Wq | Wk | Wv]
            'bqkv': jnp.zeros((3 * H,), jnp.float32),
            'Wo': nrm(bk[1], (H, H)), 'bo': jnp.zeros((H,), jnp.float32),
            'ln1_g': jnp.ones((H,), jnp.float32),
            'ln1_b': jnp.zeros((H,), jnp.float32),
            'W1': nrm(bk[2], (H, ffn_num_hiddens)),
            'b1': jnp.zeros((ffn_num_hiddens,), jnp.float32),
            'W2': nrm(bk[3], (ffn_num_hiddens, H)),
            'b2': jnp.zeros((H,), jnp.float32),
            'ln2_g': jnp.ones((H,), jnp.float32),
            'ln2_b': jnp.zeros((H,), jnp.float32),
        })
    k_end = jax.random.split(keys[-1], 4)
    params = {
        'encoder': enc,
        'hidden': {'W': nrm(k_end[0], (H, H)),
                   'b': jnp.zeros((H,), jnp.float32)},
        'mlm': {'W1': nrm(k_end[1], (H, H)),
                'b1': jnp.zeros((H,), jnp.float32),
                'ln_g': jnp.ones((H,), jnp.float32),
                'ln_b': jnp.zeros((H,), jnp.float32),
                'W2': nrm(k_end[2], (H, vocab_size)),
                'b2': jnp.zeros((vocab_size,), jnp.float32)},
        'nsp': {'W': nrm(k_end[3], (H, 2)),
                'b': jnp.zeros((2,), jnp.float32)},
    }
    return params


# ---------------------------------------------------------------------------

if __name__ == "__main__":
    # Small config consistent with the module's forward:
    vocab_size, num_hiddens = 128, 32
    ffn_num_hiddens, num_heads, num_layers = 64, 4, 2
    max_len = 64  # dropout=0 -> dropout layers are identity

    key = jax.random.PRNGKey(0)
    pkey, tkey = jax.random.split(key)
    params = init_params(pkey, vocab_size, num_hiddens, ffn_num_hiddens,
                         num_layers, max_len)

    tokens = jax.random.randint(tkey, (2, 8), 0, vocab_size, dtype=jnp.int32)
    segments = jnp.array([[0, 0, 0, 0, 1, 1, 1, 1],
                          [0, 0, 0, 1, 1, 1, 1, 1]], dtype=jnp.int32)
    pred_positions = jnp.array([[1, 5, 2], [6, 1, 5]], dtype=jnp.int32)
    valid_lens = None  # same as BERTModel(tokens, segments) in the reference

    encoded_X, mlm_Y_hat, nsp_Y_hat = bert_model_forward(
        params, tokens, segments, valid_lens, pred_positions,
        num_heads=num_heads)

    jax.block_until_ready((encoded_X, mlm_Y_hat, nsp_Y_hat))
    assert encoded_X.shape == (2, 8, num_hiddens)
    assert mlm_Y_hat.shape == (2, 3, vocab_size)
    assert nsp_Y_hat.shape == (2, 2)
    print("KERNEL_OK")
</pallas_src>

<mosaic_0001>
module attributes {stable_mosaic.version = 11 : i64} {
  func.func @kernel(%arg0: i32, %arg1: memref<1x8x32xbf16, #tpu.memory_space<vmem>>, %arg2: memref<32x96xbf16, #tpu.memory_space<vmem>>, %arg3: memref<1x96xf32, #tpu.memory_space<vmem>>, %arg4: memref<32x32xbf16, #tpu.memory_space<vmem>>, %arg5: memref<1x32xf32, #tpu.memory_space<vmem>>, %arg6: memref<1x32xf32, #tpu.memory_space<vmem>>, %arg7: memref<1x32xf32, #tpu.memory_space<vmem>>, %arg8: memref<32x64xbf16, #tpu.memory_space<vmem>>, %arg9: memref<1x64xf32, #tpu.memory_space<vmem>>, %arg10: memref<64x32xbf16, #tpu.memory_space<vmem>>, %arg11: memref<1x32xf32, #tpu.memory_space<vmem>>, %arg12: memref<1x32xf32, #tpu.memory_space<vmem>>, %arg13: memref<1x32xf32, #tpu.memory_space<vmem>>, %arg14: memref<1x8x32xbf16, #tpu.memory_space<vmem>>) attributes {dimension_semantics = [#tpu.dimension_semantics<parallel>], iteration_bounds = array<i64: 2>, scalar_prefetch = 0 : i64, scratch_operands = 0 : i64, tpu.core_type = #tpu.core_type<tc>, window_params = [{transform_indices = @transform_0, window_bounds = array<i64: 1, 8, 32>}, {pipeline_mode = #tpu.pipeline_mode<synchronous>, transform_indices = @transform_1, window_bounds = array<i64: 32, 96>}, {pipeline_mode = #tpu.pipeline_mode<synchronous>, transform_indices = @transform_2, window_bounds = array<i64: 1, 96>}, {pipeline_mode = #tpu.pipeline_mode<synchronous>, transform_indices = @transform_3, window_bounds = array<i64: 32, 32>}, {pipeline_mode = #tpu.pipeline_mode<synchronous>, transform_indices = @transform_4, window_bounds = array<i64: 1, 32>}, {pipeline_mode = #tpu.pipeline_mode<synchronous>, transform_indices = @transform_5, window_bounds = array<i64: 1, 32>}, {pipeline_mode = #tpu.pipeline_mode<synchronous>, transform_indices = @transform_6, window_bounds = array<i64: 1, 32>}, {pipeline_mode = #tpu.pipeline_mode<synchronous>, transform_indices = @transform_7, window_bounds = array<i64: 32, 64>}, {pipeline_mode = #tpu.pipeline_mode<synchronous>, transform_indices = @transform_8, window_bounds = array<i64: 1, 64>}, {pipeline_mode = #tpu.pipeline_mode<synchronous>, transform_indices = @transform_9, window_bounds = array<i64: 64, 32>}, {pipeline_mode = #tpu.pipeline_mode<synchronous>, transform_indices = @transform_10, window_bounds = array<i64: 1, 32>}, {pipeline_mode = #tpu.pipeline_mode<synchronous>, transform_indices = @transform_11, window_bounds = array<i64: 1, 32>}, {pipeline_mode = #tpu.pipeline_mode<synchronous>, transform_indices = @transform_12, window_bounds = array<i64: 1, 32>}, {transform_indices = @transform_13, window_bounds = array<i64: 1, 8, 32>}]} {
    %c0 = arith.constant 0 : index
    %c0_0 = arith.constant 0 : index
    %c0_1 = arith.constant 0 : index
    %0 = vector.load %arg1[%c0, %c0_0, %c0_1] : memref<1x8x32xbf16, #tpu.memory_space<vmem>>, vector<1x8x32xbf16>
    %1 = vector.shape_cast %0 : vector<1x8x32xbf16> to vector<8x32xbf16>
    %c0_2 = arith.constant 0 : index
    %c0_3 = arith.constant 0 : index
    %2 = vector.load %arg2[%c0_2, %c0_3] : memref<32x96xbf16, #tpu.memory_space<vmem>>, vector<32x96xbf16>
    %cst = arith.constant dense<0.000000e+00> : vector<8x96xf32>
    %3 = tpu.matmul %1, %2, %cst {dimension_numbers = #tpu.dot_dimension_numbers<[1], [0], [0], [1], [0, 0, 1, 1], [], []>} : vector<8x32xbf16>, vector<32x96xbf16>, vector<8x96xf32> -> vector<8x96xf32>
    %c0_4 = arith.constant 0 : index
    %c0_5 = arith.constant 0 : index
    %4 = vector.load %arg3[%c0_4, %c0_5] : memref<1x96xf32, #tpu.memory_space<vmem>>, vector<1x96xf32>
    %5 = vector.broadcast %4 : vector<1x96xf32> to vector<8x96xf32>
    %6 = arith.addf %3, %5 : vector<8x96xf32>
    %7 = vector.extract_strided_slice %6 {offsets = [0, 0], sizes = [8, 8], strides = [1, 1]} : vector<8x96xf32> to vector<8x8xf32>
    %cst_6 = arith.constant 0.353553385 : f32
    %8 = vector.broadcast %cst_6 : f32 to vector<8x8xf32>
    %9 = arith.mulf %7, %8 : vector<8x8xf32>
    %10 = arith.truncf %9 : vector<8x8xf32> to vector<8x8xbf16>
    %11 = vector.extract_strided_slice %6 {offsets = [0, 32], sizes = [8, 8], strides = [1, 1]} : vector<8x96xf32> to vector<8x8xf32>
    %12 = arith.truncf %11 : vector<8x8xf32> to vector<8x8xbf16>
    %13 = vector.extract_strided_slice %6 {offsets = [0, 64], sizes = [8, 8], strides = [1, 1]} : vector<8x96xf32> to vector<8x8xf32>
    %14 = arith.truncf %13 : vector<8x8xf32> to vector<8x8xbf16>
    "tpu.trace_start"() <{level = 10 : i32, message = "qd,kd->qk"}> : () -> ()
    %cst_7 = arith.constant dense<0.000000e+00> : vector<8x8xf32>
    %15 = tpu.matmul %10, %12, %cst_7 {dimension_numbers = #tpu.dot_dimension_numbers<[1], [1], [0], [0], [0, 0, 1, 0], [], []>} : vector<8x8xbf16>, vector<8x8xbf16>, vector<8x8xf32> -> vector<8x8xf32>
    "tpu.trace_stop"() : () -> ()
    %cst_8 = arith.constant dense<0xFF800000> : vector<8xf32>
    %16 = vector.multi_reduction <maximumf>, %15, %cst_8 [1] : vector<8x8xf32> to vector<8xf32>
    %17 = vector.shape_cast %16 : vector<8xf32> to vector<8x1xf32>
    %18 = vector.broadcast %17 : vector<8x1xf32> to vector<8x8xf32>
    %19 = arith.subf %15, %18 : vector<8x8xf32>
    %20 = math.exp %19 : vector<8x8xf32>
    %cst_9 = arith.constant dense<0.000000e+00> : vector<8xf32>
    %21 = vector.multi_reduction <add>, %20, %cst_9 [1] : vector<8x8xf32> to vector<8xf32>
    %22 = vector.shape_cast %21 : vector<8xf32> to vector<8x1xf32>
    %23 = tpu.reciprocal %22 {approx = true} : vector<8x1xf32> -> vector<8x1xf32>
    %24 = vector.broadcast %23 : vector<8x1xf32> to vector<8x8xf32>
    %25 = arith.mulf %20, %24 : vector<8x8xf32>
    %26 = arith.truncf %25 : vector<8x8xf32> to vector<8x8xbf16>
    %cst_10 = arith.constant dense<0.000000e+00> : vector<8x8xf32>
    %27 = tpu.matmul %26, %14, %cst_10 {dimension_numbers = #tpu.dot_dimension_numbers<[1], [0], [0], [1], [0, 0, 1, 1], [], []>} : vector<8x8xbf16>, vector<8x8xbf16>, vector<8x8xf32> -> vector<8x8xf32>
    %28 = vector.extract_strided_slice %6 {offsets = [0, 8], sizes = [8, 8], strides = [1, 1]} : vector<8x96xf32> to vector<8x8xf32>
    %cst_11 = arith.constant 0.353553385 : f32
    %29 = vector.broadcast %cst_11 : f32 to vector<8x8xf32>
    %30 = arith.mulf %28, %29 : vector<8x8xf32>
    %31 = arith.truncf %30 : vector<8x8xf32> to vector<8x8xbf16>
    %32 = vector.extract_strided_slice %6 {offsets = [0, 40], sizes = [8, 8], strides = [1, 1]} : vector<8x96xf32> to vector<8x8xf32>
    %33 = arith.truncf %32 : vector<8x8xf32> to vector<8x8xbf16>
    %34 = vector.extract_strided_slice %6 {offsets = [0, 72], sizes = [8, 8], strides = [1, 1]} : vector<8x96xf32> to vector<8x8xf32>
    %35 = arith.truncf %34 : vector<8x8xf32> to vector<8x8xbf16>
    "tpu.trace_start"() <{level = 10 : i32, message = "qd,kd->qk"}> : () -> ()
    %cst_12 = arith.constant dense<0.000000e+00> : vector<8x8xf32>
    %36 = tpu.matmul %31, %33, %cst_12 {dimension_numbers = #tpu.dot_dimension_numbers<[1], [1], [0], [0], [0, 0, 1, 0], [], []>} : vector<8x8xbf16>, vector<8x8xbf16>, vector<8x8xf32> -> vector<8x8xf32>
    "tpu.trace_stop"() : () -> ()
    %cst_13 = arith.constant dense<0xFF800000> : vector<8xf32>
    %37 = vector.multi_reduction <maximumf>, %36, %cst_13 [1] : vector<8x8xf32> to vector<8xf32>
    %38 = vector.shape_cast %37 : vector<8xf32> to vector<8x1xf32>
    %39 = vector.broadcast %38 : vector<8x1xf32> to vector<8x8xf32>
    %40 = arith.subf %36, %39 : vector<8x8xf32>
    %41 = math.exp %40 : vector<8x8xf32>
    %cst_14 = arith.constant dense<0.000000e+00> : vector<8xf32>
    %42 = vector.multi_reduction <add>, %41, %cst_14 [1] : vector<8x8xf32> to vector<8xf32>
    %43 = vector.shape_cast %42 : vector<8xf32> to vector<8x1xf32>
    %44 = tpu.reciprocal %43 {approx = true} : vector<8x1xf32> -> vector<8x1xf32>
    %45 = vector.broadcast %44 : vector<8x1xf32> to vector<8x8xf32>
    %46 = arith.mulf %41, %45 : vector<8x8xf32>
    %47 = arith.truncf %46 : vector<8x8xf32> to vector<8x8xbf16>
    %cst_15 = arith.constant dense<0.000000e+00> : vector<8x8xf32>
    %48 = tpu.matmul %47, %35, %cst_15 {dimension_numbers = #tpu.dot_dimension_numbers<[1], [0], [0], [1], [0, 0, 1, 1], [], []>} : vector<8x8xbf16>, vector<8x8xbf16>, vector<8x8xf32> -> vector<8x8xf32>
    %49 = vector.extract_strided_slice %6 {offsets = [0, 16], sizes = [8, 8], strides = [1, 1]} : vector<8x96xf32> to vector<8x8xf32>
    %cst_16 = arith.constant 0.353553385 : f32
    %50 = vector.broadcast %cst_16 : f32 to vector<8x8xf32>
    %51 = arith.mulf %49, %50 : vector<8x8xf32>
    %52 = arith.truncf %51 : vector<8x8xf32> to vector<8x8xbf16>
    %53 = vector.extract_strided_slice %6 {offsets = [0, 48], sizes = [8, 8], strides = [1, 1]} : vector<8x96xf32> to vector<8x8xf32>
    %54 = arith.truncf %53 : vector<8x8xf32> to vector<8x8xbf16>
    %55 = vector.extract_strided_slice %6 {offsets = [0, 80], sizes = [8, 8], strides = [1, 1]} : vector<8x96xf32> to vector<8x8xf32>
    %56 = arith.truncf %55 : vector<8x8xf32> to vector<8x8xbf16>
    "tpu.trace_start"() <{level = 10 : i32, message = "qd,kd->qk"}> : () -> ()
    %cst_17 = arith.constant dense<0.000000e+00> : vector<8x8xf32>
    %57 = tpu.matmul %52, %54, %cst_17 {dimension_numbers = #tpu.dot_dimension_numbers<[1], [1], [0], [0], [0, 0, 1, 0], [], []>} : vector<8x8xbf16>, vector<8x8xbf16>, vector<8x8xf32> -> vector<8x8xf32>
    "tpu.trace_stop"() : () -> ()
    %cst_18 = arith.constant dense<0xFF800000> : vector<8xf32>
    %58 = vector.multi_reduction <maximumf>, %57, %cst_18 [1] : vector<8x8xf32> to vector<8xf32>
    %59 = vector.shape_cast %58 : vector<8xf32> to vector<8x1xf32>
    %60 = vector.broadcast %59 : vector<8x1xf32> to vector<8x8xf32>
    %61 = arith.subf %57, %60 : vector<8x8xf32>
    %62 = math.exp %61 : vector<8x8xf32>
    %cst_19 = arith.constant dense<0.000000e+00> : vector<8xf32>
    %63 = vector.multi_reduction <add>, %62, %cst_19 [1] : vector<8x8xf32> to vector<8xf32>
    %64 = vector.shape_cast %63 : vector<8xf32> to vector<8x1xf32>
    %65 = tpu.reciprocal %64 {approx = true} : vector<8x1xf32> -> vector<8x1xf32>
    %66 = vector.broadcast %65 : vector<8x1xf32> to vector<8x8xf32>
    %67 = arith.mulf %62, %66 : vector<8x8xf32>
    %68 = arith.truncf %67 : vector<8x8xf32> to vector<8x8xbf16>
    %cst_20 = arith.constant dense<0.000000e+00> : vector<8x8xf32>
    %69 = tpu.matmul %68, %56, %cst_20 {dimension_numbers = #tpu.dot_dimension_numbers<[1], [0], [0], [1], [0, 0, 1, 1], [], []>} : vector<8x8xbf16>, vector<8x8xbf16>, vector<8x8xf32> -> vector<8x8xf32>
    %70 = vector.extract_strided_slice %6 {offsets = [0, 24], sizes = [8, 8], strides = [1, 1]} : vector<8x96xf32> to vector<8x8xf32>
    %cst_21 = arith.constant 0.353553385 : f32
    %71 = vector.broadcast %cst_21 : f32 to vector<8x8xf32>
    %72 = arith.mulf %70, %71 : vector<8x8xf32>
    %73 = arith.truncf %72 : vector<8x8xf32> to vector<8x8xbf16>
    %74 = vector.extract_strided_slice %6 {offsets = [0, 56], sizes = [8, 8], strides = [1, 1]} : vector<8x96xf32> to vector<8x8xf32>
    %75 = arith.truncf %74 : vector<8x8xf32> to vector<8x8xbf16>
    %76 = vector.extract_strided_slice %6 {offsets = [0, 88], sizes = [8, 8], strides = [1, 1]} : vector<8x96xf32> to vector<8x8xf32>
    %77 = arith.truncf %76 : vector<8x8xf32> to vector<8x8xbf16>
    "tpu.trace_start"() <{level = 10 : i32, message = "qd,kd->qk"}> : () -> ()
    %cst_22 = arith.constant dense<0.000000e+00> : vector<8x8xf32>
    %78 = tpu.matmul %73, %75, %cst_22 {dimension_numbers = #tpu.dot_dimension_numbers<[1], [1], [0], [0], [0, 0, 1, 0], [], []>} : vector<8x8xbf16>, vector<8x8xbf16>, vector<8x8xf32> -> vector<8x8xf32>
    "tpu.trace_stop"() : () -> ()
    %cst_23 = arith.constant dense<0xFF800000> : vector<8xf32>
    %79 = vector.multi_reduction <maximumf>, %78, %cst_23 [1] : vector<8x8xf32> to vector<8xf32>
    %80 = vector.shape_cast %79 : vector<8xf32> to vector<8x1xf32>
    %81 = vector.broadcast %80 : vector<8x1xf32> to vector<8x8xf32>
    %82 = arith.subf %78, %81 : vector<8x8xf32>
    %83 = math.exp %82 : vector<8x8xf32>
    %cst_24 = arith.constant dense<0.000000e+00> : vector<8xf32>
    %84 = vector.multi_reduction <add>, %83, %cst_24 [1] : vector<8x8xf32> to vector<8xf32>
    %85 = vector.shape_cast %84 : vector<8xf32> to vector<8x1xf32>
    %86 = tpu.reciprocal %85 {approx = true} : vector<8x1xf32> -> vector<8x1xf32>
    %87 = vector.broadcast %86 : vector<8x1xf32> to vector<8x8xf32>
    %88 = arith.mulf %83, %87 : vector<8x8xf32>
    %89 = arith.truncf %88 : vector<8x8xf32> to vector<8x8xbf16>
    %cst_25 = arith.constant dense<0.000000e+00> : vector<8x8xf32>
    %90 = tpu.matmul %89, %77, %cst_25 {dimension_numbers = #tpu.dot_dimension_numbers<[1], [0], [0], [1], [0, 0, 1, 1], [], []>} : vector<8x8xbf16>, vector<8x8xbf16>, vector<8x8xf32> -> vector<8x8xf32>
    %91 = tpu.concatenate %27, %48, %69, %90 in 1 : vector<8x8xf32>, vector<8x8xf32>, vector<8x8xf32>, vector<8x8xf32> -> vector<8x32xf32>
    %92 = arith.truncf %91 : vector<8x32xf32> to vector<8x32xbf16>
    %c0_26 = arith.constant 0 : index
    %c0_27 = arith.constant 0 : index
    %93 = vector.load %arg4[%c0_26, %c0_27] : memref<32x32xbf16, #tpu.memory_space<vmem>>, vector<32x32xbf16>
    %cst_28 = arith.constant dense<0.000000e+00> : vector<8x32xf32>
    %94 = tpu.matmul %92, %93, %cst_28 {dimension_numbers = #tpu.dot_dimension_numbers<[1], [0], [0], [1], [0, 0, 1, 1], [], []>} : vector<8x32xbf16>, vector<32x32xbf16>, vector<8x32xf32> -> vector<8x32xf32>
    %c0_29 = arith.constant 0 : index
    %c0_30 = arith.constant 0 : index
    %95 = vector.load %arg5[%c0_29, %c0_30] : memref<1x32xf32, #tpu.memory_space<vmem>>, vector<1x32xf32>
    %96 = vector.broadcast %95 : vector<1x32xf32> to vector<8x32xf32>
    %97 = arith.addf %94, %96 : vector<8x32xf32>
    %98 = arith.extf %1 : vector<8x32xbf16> to vector<8x32xf32>
    %99 = arith.addf %98, %97 : vector<8x32xf32>
    %c0_31 = arith.constant 0 : index
    %c0_32 = arith.constant 0 : index
    %100 = vector.load %arg6[%c0_31, %c0_32] : memref<1x32xf32, #tpu.memory_space<vmem>>, vector<1x32xf32>
    %c0_33 = arith.constant 0 : index
    %c0_34 = arith.constant 0 : index
    %101 = vector.load %arg7[%c0_33, %c0_34] : memref<1x32xf32, #tpu.memory_space<vmem>>, vector<1x32xf32>
    %cst_35 = arith.constant dense<0.000000e+00> : vector<8xf32>
    %102 = vector.multi_reduction <add>, %99, %cst_35 [1] : vector<8x32xf32> to vector<8xf32>
    %103 = vector.shape_cast %102 : vector<8xf32> to vector<8x1xf32>
    %cst_36 = arith.constant 3.200000e+01 : f32
    %104 = vector.broadcast %cst_36 : f32 to vector<8x1xf32>
    %105 = arith.divf %103, %104 : vector<8x1xf32>
    %106 = vector.broadcast %105 : vector<8x1xf32> to vector<8x32xf32>
    %107 = arith.subf %99, %106 : vector<8x32xf32>
    %108 = arith.mulf %107, %107 : vector<8x32xf32>
    %cst_37 = arith.constant dense<0.000000e+00> : vector<8xf32>
    %109 = vector.multi_reduction <add>, %108, %cst_37 [1] : vector<8x32xf32> to vector<8xf32>
    %110 = vector.shape_cast %109 : vector<8xf32> to vector<8x1xf32>
    %cst_38 = arith.constant 3.200000e+01 : f32
    %111 = vector.broadcast %cst_38 : f32 to vector<8x1xf32>
    %112 = arith.divf %110, %111 : vector<8x1xf32>
    %113 = vector.broadcast %105 : vector<8x1xf32> to vector<8x32xf32>
    %114 = arith.subf %99, %113 : vector<8x32xf32>
    %cst_39 = arith.constant 9.99999974E-6 : f32
    %115 = vector.broadcast %cst_39 : f32 to vector<8x1xf32>
    %116 = arith.addf %112, %115 : vector<8x1xf32>
    %117 = math.rsqrt %116 : vector<8x1xf32>
    %118 = vector.broadcast %117 : vector<8x1xf32> to vector<8x32xf32>
    %119 = arith.mulf %114, %118 : vector<8x32xf32>
    %120 = vector.broadcast %100 : vector<1x32xf32> to vector<8x32xf32>
    %121 = arith.mulf %119, %120 : vector<8x32xf32>
    %122 = vector.broadcast %101 : vector<1x32xf32> to vector<8x32xf32>
    %123 = arith.addf %121, %122 : vector<8x32xf32>
    %124 = arith.truncf %123 : vector<8x32xf32> to vector<8x32xbf16>
    %c0_40 = arith.constant 0 : index
    %c0_41 = arith.constant 0 : index
    %125 = vector.load %arg8[%c0_40, %c0_41] : memref<32x64xbf16, #tpu.memory_space<vmem>>, vector<32x64xbf16>
    %cst_42 = arith.constant dense<0.000000e+00> : vector<8x64xf32>
    %126 = tpu.matmul %124, %125, %cst_42 {dimension_numbers = #tpu.dot_dimension_numbers<[1], [0], [0], [1], [0, 0, 1, 1], [], []>} : vector<8x32xbf16>, vector<32x64xbf16>, vector<8x64xf32> -> vector<8x64xf32>
    %c0_43 = arith.constant 0 : index
    %c0_44 = arith.constant 0 : index
    %127 = vector.load %arg9[%c0_43, %c0_44] : memref<1x64xf32, #tpu.memory_space<vmem>>, vector<1x64xf32>
    %128 = vector.broadcast %127 : vector<1x64xf32> to vector<8x64xf32>
    %129 = arith.addf %126, %128 : vector<8x64xf32>
    %cst_45 = arith.constant 0.000000e+00 : f32
    %130 = vector.broadcast %cst_45 : f32 to vector<8x64xf32>
    %131 = arith.maximumf %129, %130 : vector<8x64xf32>
    %132 = arith.truncf %131 : vector<8x64xf32> to vector<8x64xbf16>
    %c0_46 = arith.constant 0 : index
    %c0_47 = arith.constant 0 : index
    %133 = vector.load %arg10[%c0_46, %c0_47] : memref<64x32xbf16, #tpu.memory_space<vmem>>, vector<64x32xbf16>
    %cst_48 = arith.constant dense<0.000000e+00> : vector<8x32xf32>
    %134 = tpu.matmul %132, %133, %cst_48 {dimension_numbers = #tpu.dot_dimension_numbers<[1], [0], [0], [1], [0, 0, 1, 1], [], []>} : vector<8x64xbf16>, vector<64x32xbf16>, vector<8x32xf32> -> vector<8x32xf32>
    %c0_49 = arith.constant 0 : index
    %c0_50 = arith.constant 0 : index
    %135 = vector.load %arg11[%c0_49, %c0_50] : memref<1x32xf32, #tpu.memory_space<vmem>>, vector<1x32xf32>
    %136 = vector.broadcast %135 : vector<1x32xf32> to vector<8x32xf32>
    %137 = arith.addf %134, %136 : vector<8x32xf32>
    %138 = arith.addf %123, %137 : vector<8x32xf32>
    %c0_51 = arith.constant 0 : index
    %c0_52 = arith.constant 0 : index
    %139 = vector.load %arg12[%c0_51, %c0_52] : memref<1x32xf32, #tpu.memory_space<vmem>>, vector<1x32xf32>
    %c0_53 = arith.constant 0 : index
    %c0_54 = arith.constant 0 : index
    %140 = vector.load %arg13[%c0_53, %c0_54] : memref<1x32xf32, #tpu.memory_space<vmem>>, vector<1x32xf32>
    %cst_55 = arith.constant dense<0.000000e+00> : vector<8xf32>
    %141 = vector.multi_reduction <add>, %138, %cst_55 [1] : vector<8x32xf32> to vector<8xf32>
    %142 = vector.shape_cast %141 : vector<8xf32> to vector<8x1xf32>
    %cst_56 = arith.constant 3.200000e+01 : f32
    %143 = vector.broadcast %cst_56 : f32 to vector<8x1xf32>
    %144 = arith.divf %142, %143 : vector<8x1xf32>
    %145 = vector.broadcast %144 : vector<8x1xf32> to vector<8x32xf32>
    %146 = arith.subf %138, %145 : vector<8x32xf32>
    %147 = arith.mulf %146, %146 : vector<8x32xf32>
    %cst_57 = arith.constant dense<0.000000e+00> : vector<8xf32>
    %148 = vector.multi_reduction <add>, %147, %cst_57 [1] : vector<8x32xf32> to vector<8xf32>
    %149 = vector.shape_cast %148 : vector<8xf32> to vector<8x1xf32>
    %cst_58 = arith.constant 3.200000e+01 : f32
    %150 = vector.broadcast %cst_58 : f32 to vector<8x1xf32>
    %151 = arith.divf %149, %150 : vector<8x1xf32>
    %152 = vector.broadcast %144 : vector<8x1xf32> to vector<8x32xf32>
    %153 = arith.subf %138, %152 : vector<8x32xf32>
    %cst_59 = arith.constant 9.99999974E-6 : f32
    %154 = vector.broadcast %cst_59 : f32 to vector<8x1xf32>
    %155 = arith.addf %151, %154 : vector<8x1xf32>
    %156 = math.rsqrt %155 : vector<8x1xf32>
    %157 = vector.broadcast %156 : vector<8x1xf32> to vector<8x32xf32>
    %158 = arith.mulf %153, %157 : vector<8x32xf32>
    %159 = vector.broadcast %139 : vector<1x32xf32> to vector<8x32xf32>
    %160 = arith.mulf %158, %159 : vector<8x32xf32>
    %161 = vector.broadcast %140 : vector<1x32xf32> to vector<8x32xf32>
    %162 = arith.addf %160, %161 : vector<8x32xf32>
    %163 = arith.truncf %162 : vector<8x32xf32> to vector<8x32xbf16>
    %c0_60 = arith.constant 0 : index
    %c0_61 = arith.constant 0 : index
    %c0_62 = arith.constant 0 : index
    %164 = vector.load %arg14[%c0_60, %c0_61, %c0_62] : memref<1x8x32xbf16, #tpu.memory_space<vmem>>, vector<1x8x32xbf16>
    %165 = vector.shape_cast %164 : vector<1x8x32xbf16> to vector<8x32xbf16>
    %166 = vector.shape_cast %163 : vector<8x32xbf16> to vector<1x8x32xbf16>
    tpu.vector_store %arg14[%c0_60, %c0_61, %c0_62], %166 {strides = array<i32>} : memref<1x8x32xbf16, #tpu.memory_space<vmem>>, vector<1x8x32xbf16>,
    return
  }
  func.func @transform_0(%arg0: i32) -> (i32, i32, i32) {
    %c0_i32 = arith.constant 0 : i32
    %c0_i32_0 = arith.constant 0 : i32
    %c0_i32_1 = arith.constant 0 : i32
    return %arg0, %c0_i32, %c0_i32_0 : i32, i32, i32
  }
  func.func @transform_1(%arg0: i32) -> (i32, i32) {
    %c0_i32 = arith.constant 0 : i32
    %c0_i32_0 = arith.constant 0 : i32
    %c0_i32_1 = arith.constant 0 : i32
    return %c0_i32, %c0_i32_0 : i32, i32
  }
  func.func @transform_2(%arg0: i32) -> (i32, i32) {
    %c0_i32 = arith.constant 0 : i32
    %c0_i32_0 = arith.constant 0 : i32
    %c0_i32_1 = arith.constant 0 : i32
    return %c0_i32, %c0_i32_0 : i32, i32
  }
  func.func @transform_3(%arg0: i32) -> (i32, i32) {
    %c0_i32 = arith.constant 0 : i32
    %c0_i32_0 = arith.constant 0 : i32
    %c0_i32_1 = arith.constant 0 : i32
    return %c0_i32, %c0_i32_0 : i32, i32
  }
  func.func @transform_4(%arg0: i32) -> (i32, i32) {
    %c0_i32 = arith.constant 0 : i32
    %c0_i32_0 = arith.constant 0 : i32
    %c0_i32_1 = arith.constant 0 : i32
    return %c0_i32, %c0_i32_0 : i32, i32
  }
  func.func @transform_5(%arg0: i32) -> (i32, i32) {
    %c0_i32 = arith.constant 0 : i32
    %c0_i32_0 = arith.constant 0 : i32
    %c0_i32_1 = arith.constant 0 : i32
    return %c0_i32, %c0_i32_0 : i32, i32
  }
  func.func @transform_6(%arg0: i32) -> (i32, i32) {
    %c0_i32 = arith.constant 0 : i32
    %c0_i32_0 = arith.constant 0 : i32
    %c0_i32_1 = arith.constant 0 : i32
    return %c0_i32, %c0_i32_0 : i32, i32
  }
  func.func @transform_7(%arg0: i32) -> (i32, i32) {
    %c0_i32 = arith.constant 0 : i32
    %c0_i32_0 = arith.constant 0 : i32
    %c0_i32_1 = arith.constant 0 : i32
    return %c0_i32, %c0_i32_0 : i32, i32
  }
  func.func @transform_8(%arg0: i32) -> (i32, i32) {
    %c0_i32 = arith.constant 0 : i32
    %c0_i32_0 = arith.constant 0 : i32
    %c0_i32_1 = arith.constant 0 : i32
    return %c0_i32, %c0_i32_0 : i32, i32
  }
  func.func @transform_9(%arg0: i32) -> (i32, i32) {
    %c0_i32 = arith.constant 0 : i32
    %c0_i32_0 = arith.constant 0 : i32
    %c0_i32_1 = arith.constant 0 : i32
    return %c0_i32, %c0_i32_0 : i32, i32
  }
  func.func @transform_10(%arg0: i32) -> (i32, i32) {
    %c0_i32 = arith.constant 0 : i32
    %c0_i32_0 = arith.constant 0 : i32
    %c0_i32_1 = arith.constant 0 : i32
    return %c0_i32, %c0_i32_0 : i32, i32
  }
  func.func @transform_11(%arg0: i32) -> (i32, i32) {
    %c0_i32 = arith.constant 0 : i32
    %c0_i32_0 = arith.constant 0 : i32
    %c0_i32_1 = arith.constant 0 : i32
    return %c0_i32, %c0_i32_0 : i32, i32
  }
  func.func @transform_12(%arg0: i32) -> (i32, i32) {
    %c0_i32 = arith.constant 0 : i32
    %c0_i32_0 = arith.constant 0 : i32
    %c0_i32_1 = arith.constant 0 : i32
    return %c0_i32, %c0_i32_0 : i32, i32
  }
  func.func @transform_13(%arg0: i32) -> (i32, i32, i32) {
    %c0_i32 = arith.constant 0 : i32
    %c0_i32_0 = arith.constant 0 : i32
    %c0_i32_1 = arith.constant 0 : i32
    return %arg0, %c0_i32, %c0_i32_0 : i32, i32, i32
  }
}

module attributes {stable_mosaic.version = 11 : i64} {
  func.func @_mlm_kernel(%arg0: i32, %arg1: memref<6x32xbf16, #tpu.memory_space<vmem>>, %arg2: memref<32x32xbf16, #tpu.memory_space<vmem>>, %arg3: memref<1x32xf32, #tpu.memory_space<vmem>>, %arg4: memref<1x32xf32, #tpu.memory_space<vmem>>, %arg5: memref<1x32xf32, #tpu.memory_space<vmem>>, %arg6: memref<32x128xbf16, #tpu.memory_space<vmem>>, %arg7: memref<1x128xf32, #tpu.memory_space<vmem>>, %arg8: memref<6x128xf32, #tpu.memory_space<vmem>>) attributes {dimension_semantics = [#tpu.dimension_semantics<arbitrary>], iteration_bounds = array<i64: 1>, scalar_prefetch = 0 : i64, scratch_operands = 0 : i64, tpu.core_type = #tpu.core_type<tc>, window_params = [{pipeline_mode = #tpu.pipeline_mode<synchronous>, transform_indices = @transform_0, window_bounds = array<i64: 6, 32>}, {pipeline_mode = #tpu.pipeline_mode<synchronous>, transform_indices = @transform_1, window_bounds = array<i64: 32, 32>}, {pipeline_mode = #tpu.pipeline_mode<synchronous>, transform_indices = @transform_2, window_bounds = array<i64: 1, 32>}, {pipeline_mode = #tpu.pipeline_mode<synchronous>, transform_indices = @transform_3, window_bounds = array<i64: 1, 32>}, {pipeline_mode = #tpu.pipeline_mode<synchronous>, transform_indices = @transform_4, window_bounds = array<i64: 1, 32>}, {pipeline_mode = #tpu.pipeline_mode<synchronous>, transform_indices = @transform_5, window_bounds = array<i64: 32, 128>}, {pipeline_mode = #tpu.pipeline_mode<synchronous>, transform_indices = @transform_6, window_bounds = array<i64: 1, 128>}, {pipeline_mode = #tpu.pipeline_mode<synchronous>, transform_indices = @transform_7, window_bounds = array<i64: 6, 128>}]} {
    %c0 = arith.constant 0 : index
    %c0_0 = arith.constant 0 : index
    %0 = vector.load %arg1[%c0, %c0_0] : memref<6x32xbf16, #tpu.memory_space<vmem>>, vector<6x32xbf16>
    %c0_1 = arith.constant 0 : index
    %c0_2 = arith.constant 0 : index
    %1 = vector.load %arg2[%c0_1, %c0_2] : memref<32x32xbf16, #tpu.memory_space<vmem>>, vector<32x32xbf16>
    %cst = arith.constant dense<0.000000e+00> : vector<6x32xf32>
    %2 = tpu.matmul %0, %1, %cst {dimension_numbers = #tpu.dot_dimension_numbers<[1], [0], [0], [1], [0, 0, 1, 1], [], []>} : vector<6x32xbf16>, vector<32x32xbf16>, vector<6x32xf32> -> vector<6x32xf32>
    %c0_3 = arith.constant 0 : index
    %c0_4 = arith.constant 0 : index
    %3 = vector.load %arg3[%c0_3, %c0_4] : memref<1x32xf32, #tpu.memory_space<vmem>>, vector<1x32xf32>
    %4 = vector.broadcast %3 : vector<1x32xf32> to vector<6x32xf32>
    %5 = arith.addf %2, %4 : vector<6x32xf32>
    %cst_5 = arith.constant 0.000000e+00 : f32
    %6 = vector.broadcast %cst_5 : f32 to vector<6x32xf32>
    %7 = arith.maximumf %5, %6 : vector<6x32xf32>
    %c0_6 = arith.constant 0 : index
    %c0_7 = arith.constant 0 : index
    %8 = vector.load %arg4[%c0_6, %c0_7] : memref<1x32xf32, #tpu.memory_space<vmem>>, vector<1x32xf32>
    %c0_8 = arith.constant 0 : index
    %c0_9 = arith.constant 0 : index
    %9 = vector.load %arg5[%c0_8, %c0_9] : memref<1x32xf32, #tpu.memory_space<vmem>>, vector<1x32xf32>
    %cst_10 = arith.constant dense<0.000000e+00> : vector<6xf32>
    %10 = vector.multi_reduction <add>, %7, %cst_10 [1] : vector<6x32xf32> to vector<6xf32>
    %11 = vector.shape_cast %10 : vector<6xf32> to vector<6x1xf32>
    %cst_11 = arith.constant 3.200000e+01 : f32
    %12 = vector.broadcast %cst_11 : f32 to vector<6x1xf32>
    %13 = arith.divf %11, %12 : vector<6x1xf32>
    %14 = vector.broadcast %13 : vector<6x1xf32> to vector<6x32xf32>
    %15 = arith.subf %7, %14 : vector<6x32xf32>
    %16 = arith.mulf %15, %15 : vector<6x32xf32>
    %cst_12 = arith.constant dense<0.000000e+00> : vector<6xf32>
    %17 = vector.multi_reduction <add>, %16, %cst_12 [1] : vector<6x32xf32> to vector<6xf32>
    %18 = vector.shape_cast %17 : vector<6xf32> to vector<6x1xf32>
    %cst_13 = arith.constant 3.200000e+01 : f32
    %19 = vector.broadcast %cst_13 : f32 to vector<6x1xf32>
    %20 = arith.divf %18, %19 : vector<6x1xf32>
    %21 = vector.broadcast %13 : vector<6x1xf32> to vector<6x32xf32>
    %22 = arith.subf %7, %21 : vector<6x32xf32>
    %cst_14 = arith.constant 9.99999974E-6 : f32
    %23 = vector.broadcast %cst_14 : f32 to vector<6x1xf32>
    %24 = arith.addf %20, %23 : vector<6x1xf32>
    %25 = math.rsqrt %24 : vector<6x1xf32>
    %26 = vector.broadcast %25 : vector<6x1xf32> to vector<6x32xf32>
    %27 = arith.mulf %22, %26 : vector<6x32xf32>
    %28 = vector.broadcast %8 : vector<1x32xf32> to vector<6x32xf32>
    %29 = arith.mulf %27, %28 : vector<6x32xf32>
    %30 = vector.broadcast %9 : vector<1x32xf32> to vector<6x32xf32>
    %31 = arith.addf %29, %30 : vector<6x32xf32>
    %32 = arith.truncf %31 : vector<6x32xf32> to vector<6x32xbf16>
    %c0_15 = arith.constant 0 : index
    %c0_16 = arith.constant 0 : index
    %33 = vector.load %arg6[%c0_15, %c0_16] : memref<32x128xbf16, #tpu.memory_space<vmem>>, vector<32x128xbf16>
    %cst_17 = arith.constant dense<0.000000e+00> : vector<6x128xf32>
    %34 = tpu.matmul %32, %33, %cst_17 {dimension_numbers = #tpu.dot_dimension_numbers<[1], [0], [0], [1], [0, 0, 1, 1], [], []>} : vector<6x32xbf16>, vector<32x128xbf16>, vector<6x128xf32> -> vector<6x128xf32>
    %c0_18 = arith.constant 0 : index
    %c0_19 = arith.constant 0 : index
    %35 = vector.load %arg7[%c0_18, %c0_19] : memref<1x128xf32, #tpu.memory_space<vmem>>, vector<1x128xf32>
    %36 = vector.broadcast %35 : vector<1x128xf32> to vector<6x128xf32>
    %37 = arith.addf %34, %36 : vector<6x128xf32>
    %c0_20 = arith.constant 0 : index
    %c0_21 = arith.constant 0 : index
    %38 = vector.load %arg8[%c0_20, %c0_21] : memref<6x128xf32, #tpu.memory_space<vmem>>, vector<6x128xf32>
    tpu.vector_store %arg8[%c0_20, %c0_21], %37 {strides = array<i32>} : memref<6x128xf32, #tpu.memory_space<vmem>>, vector<6x128xf32>,
    return
  }
  func.func @transform_0(%arg0: i32) -> (i32, i32) {
    %c0_i32 = arith.constant 0 : i32
    %c0_i32_0 = arith.constant 0 : i32
    %c0_i32_1 = arith.constant 0 : i32
    return %c0_i32, %c0_i32_0 : i32, i32
  }
  func.func @transform_1(%arg0: i32) -> (i32, i32) {
    %c0_i32 = arith.constant 0 : i32
    %c0_i32_0 = arith.constant 0 : i32
    %c0_i32_1 = arith.constant 0 : i32
    return %c0_i32, %c0_i32_0 : i32, i32
  }
  func.func @transform_2(%arg0: i32) -> (i32, i32) {
    %c0_i32 = arith.constant 0 : i32
    %c0_i32_0 = arith.constant 0 : i32
    %c0_i32_1 = arith.constant 0 : i32
    return %c0_i32, %c0_i32_0 : i32, i32
  }
  func.func @transform_3(%arg0: i32) -> (i32, i32) {
    %c0_i32 = arith.constant 0 : i32
    %c0_i32_0 = arith.constant 0 : i32
    %c0_i32_1 = arith.constant 0 : i32
    return %c0_i32, %c0_i32_0 : i32, i32
  }
  func.func @transform_4(%arg0: i32) -> (i32, i32) {
    %c0_i32 = arith.constant 0 : i32
    %c0_i32_0 = arith.constant 0 : i32
    %c0_i32_1 = arith.constant 0 : i32
    return %c0_i32, %c0_i32_0 : i32, i32
  }
  func.func @transform_5(%arg0: i32) -> (i32, i32) {
    %c0_i32 = arith.constant 0 : i32
    %c0_i32_0 = arith.constant 0 : i32
    %c0_i32_1 = arith.constant 0 : i32
    return %c0_i32, %c0_i32_0 : i32, i32
  }
  func.func @transform_6(%arg0: i32) -> (i32, i32) {
    %c0_i32 = arith.constant 0 : i32
    %c0_i32_0 = arith.constant 0 : i32
    %c0_i32_1 = arith.constant 0 : i32
    return %c0_i32, %c0_i32_0 : i32, i32
  }
  func.func @transform_7(%arg0: i32) -> (i32, i32) {
    %c0_i32 = arith.constant 0 : i32
    %c0_i32_0 = arith.constant 0 : i32
    %c0_i32_1 = arith.constant 0 : i32
    return %c0_i32, %c0_i32_0 : i32, i32
  }
}

module attributes {stable_mosaic.version = 11 : i64} {
  func.func @_pooler_nsp_kernel(%arg0: i32, %arg1: memref<2x32xbf16, #tpu.memory_space<vmem>>, %arg2: memref<32x32xbf16, #tpu.memory_space<vmem>>, %arg3: memref<1x32xf32, #tpu.memory_space<vmem>>, %arg4: memref<32x2xbf16, #tpu.memory_space<vmem>>, %arg5: memref<1x2xf32, #tpu.memory_space<vmem>>, %arg6: memref<2x2xf32, #tpu.memory_space<vmem>>) attributes {dimension_semantics = [#tpu.dimension_semantics<arbitrary>], iteration_bounds = array<i64: 1>, scalar_prefetch = 0 : i64, scratch_operands = 0 : i64, tpu.core_type = #tpu.core_type<tc>, window_params = [{pipeline_mode = #tpu.pipeline_mode<synchronous>, transform_indices = @transform_0, window_bounds = array<i64: 2, 32>}, {pipeline_mode = #tpu.pipeline_mode<synchronous>, transform_indices = @transform_1, window_bounds = array<i64: 32, 32>}, {pipeline_mode = #tpu.pipeline_mode<synchronous>, transform_indices = @transform_2, window_bounds = array<i64: 1, 32>}, {pipeline_mode = #tpu.pipeline_mode<synchronous>, transform_indices = @transform_3, window_bounds = array<i64: 32, 2>}, {pipeline_mode = #tpu.pipeline_mode<synchronous>, transform_indices = @transform_4, window_bounds = array<i64: 1, 2>}, {pipeline_mode = #tpu.pipeline_mode<synchronous>, transform_indices = @transform_5, window_bounds = array<i64: 2, 2>}]} {
    %c0 = arith.constant 0 : index
    %c0_0 = arith.constant 0 : index
    %0 = vector.load %arg1[%c0, %c0_0] : memref<2x32xbf16, #tpu.memory_space<vmem>>, vector<2x32xbf16>
    %c0_1 = arith.constant 0 : index
    %c0_2 = arith.constant 0 : index
    %1 = vector.load %arg2[%c0_1, %c0_2] : memref<32x32xbf16, #tpu.memory_space<vmem>>, vector<32x32xbf16>
    %cst = arith.constant dense<0.000000e+00> : vector<2x32xf32>
    %2 = tpu.matmul %0, %1, %cst {dimension_numbers = #tpu.dot_dimension_numbers<[1], [0], [0], [1], [0, 0, 1, 1], [], []>} : vector<2x32xbf16>, vector<32x32xbf16>, vector<2x32xf32> -> vector<2x32xf32>
    %c0_3 = arith.constant 0 : index
    %c0_4 = arith.constant 0 : index
    %3 = vector.load %arg3[%c0_3, %c0_4] : memref<1x32xf32, #tpu.memory_space<vmem>>, vector<1x32xf32>
    %4 = vector.broadcast %3 : vector<1x32xf32> to vector<2x32xf32>
    %5 = arith.addf %2, %4 : vector<2x32xf32>
    %6 = math.tanh %5 : vector<2x32xf32>
    %7 = arith.truncf %6 : vector<2x32xf32> to vector<2x32xbf16>
    %c0_5 = arith.constant 0 : index
    %c0_6 = arith.constant 0 : index
    %8 = vector.load %arg4[%c0_5, %c0_6] : memref<32x2xbf16, #tpu.memory_space<vmem>>, vector<32x2xbf16>
    %cst_7 = arith.constant dense<0.000000e+00> : vector<2x2xf32>
    %9 = tpu.matmul %7, %8, %cst_7 {dimension_numbers = #tpu.dot_dimension_numbers<[1], [0], [0], [1], [0, 0, 1, 1], [], []>} : vector<2x32xbf16>, vector<32x2xbf16>, vector<2x2xf32> -> vector<2x2xf32>
    %c0_8 = arith.constant 0 : index
    %c0_9 = arith.constant 0 : index
    %10 = vector.load %arg5[%c0_8, %c0_9] : memref<1x2xf32, #tpu.memory_space<vmem>>, vector<1x2xf32>
    %11 = vector.broadcast %10 : vector<1x2xf32> to vector<2x2xf32>
    %12 = arith.addf %9, %11 : vector<2x2xf32>
    %c0_10 = arith.constant 0 : index
    %c0_11 = arith.constant 0 : index
    %13 = vector.load %arg6[%c0_10, %c0_11] : memref<2x2xf32, #tpu.memory_space<vmem>>, vector<2x2xf32>
    tpu.vector_store %arg6[%c0_10, %c0_11], %12 {strides = array<i32>} : memref<2x2xf32, #tpu.memory_space<vmem>>, vector<2x2xf32>,
    return
  }
  func.func @transform_0(%arg0: i32) -> (i32, i32) {
    %c0_i32 = arith.constant 0 : i32
    %c0_i32_0 = arith.constant 0 : i32
    %c0_i32_1 = arith.constant 0 : i32
    return %c0_i32, %c0_i32_0 : i32, i32
  }
  func.func @transform_1(%arg0: i32) -> (i32, i32) {
    %c0_i32 = arith.constant 0 : i32
    %c0_i32_0 = arith.constant 0 : i32
    %c0_i32_1 = arith.constant 0 : i32
    return %c0_i32, %c0_i32_0 : i32, i32
  }
  func.func @transform_2(%arg0: i32) -> (i32, i32) {
    %c0_i32 = arith.constant 0 : i32
    %c0_i32_0 = arith.constant 0 : i32
    %c0_i32_1 = arith.constant 0 : i32
    return %c0_i32, %c0_i32_0 : i32, i32
  }
  func.func @transform_3(%arg0: i32) -> (i32, i32) {
    %c0_i32 = arith.constant 0 : i32
    %c0_i32_0 = arith.constant 0 : i32
    %c0_i32_1 = arith.constant 0 : i32
    return %c0_i32, %c0_i32_0 : i32, i32
  }
  func.func @transform_4(%arg0: i32) -> (i32, i32) {
    %c0_i32 = arith.constant 0 : i32
    %c0_i32_0 = arith.constant 0 : i32
    %c0_i32_1 = arith.constant 0 : i32
    return %c0_i32, %c0_i32_0 : i32, i32
  }
  func.func @transform_5(%arg0: i32) -> (i32, i32) {
    %c0_i32 = arith.constant 0 : i32
    %c0_i32_0 = arith.constant 0 : i32
    %c0_i32_1 = arith.constant 0 : i32
    return %c0_i32, %c0_i32_0 : i32, i32
  }
}

</mosaic_0001>

<llo_original>
// kernel: bert_model_forward.7
$region0: #{bert_model_forward.7}
  #allocation0 [shape = 'u32[]', space=smem, size = 0x4, offset = 0x4, fixed_abs, tag = 'smem constant byte address 0x4 - core index']
  #allocation1 [shape = 'u32[72,128]{1,0:T(1,128)}', space=vmem, size = 0x9000, scoped, tag = 'internal scratch']
  %s0 = inlined_call_operand.vmem [shape: bf16[2,32], index: 0, kind: input, shape index: {}]
  %s1 = inlined_call_operand.vmem [shape: bf16[32,32], index: 1, kind: input, shape index: {}]
  %s2 = inlined_call_operand.vmem [shape: f32[1,32], index: 2, kind: input, shape index: {}]
  %s3 = inlined_call_operand.vmem [shape: bf16[32,2], index: 3, kind: input, shape index: {}]
  %s4 = inlined_call_operand.vmem [shape: f32[1,2], index: 4, kind: input, shape index: {}]
  %s5 = inlined_call_operand.hbm [shape: f32[2,2], index: 5, kind: output, shape index: {}]
  %s6 = sld [smem:[#allocation0]]
  $region30: #{bert_model_forward.7} parent=0
    _
  %s8 = ssub.s32 1, %s6
  %s9 = scalar_select 0, %s8, %s6
  $region1: #{bert_model_forward.7} parent=0
    #allocation2 [shape = 'u8[1024]{0}', space=vmem, size = 0x400, scoped, tag = 'output window, operand 0, single buffered']
    #allocation3 [shape = 's32[1]{0}', space=sflag, size = 0x4, scoped, tag = 'scoped memory for bert_model_forward.7']
    %10 = vsyncpa [#allocation3], 0
    // Predicated region
    $region2: #{bert_model_forward.7} parent=1 // pred_check
      _
    $region3: #{bert_model_forward.7} parent=1 // pred_check_branch
      %12 = sbr.rel (0) target = $region5
    $region4: #{bert_model_forward.7} parent=1 // pred_region
      _
    $region5: #{bert_model_forward.7} parent=1 // pred_fallthru
      _
    // Predicated region
    $region6: #{bert_model_forward.7} parent=1 // pred_check
      _
    $region7: #{bert_model_forward.7} parent=1 // pred_check_branch
      %14 = sbr.rel (0) target = $region9
    $region8: #{bert_model_forward.7} parent=1 // pred_region
      _
    $region9: #{bert_model_forward.7} parent=1 // pred_fallthru
      _
    // Predicated region
    $region10: #{bert_model_forward.7} parent=1 // pred_check
      _
    $region11: #{bert_model_forward.7} parent=1 // pred_check_branch
      %16 = sbr.rel (0) target = $region13
    $region12: #{bert_model_forward.7} parent=1 // pred_region
      _
    $region13: #{bert_model_forward.7} parent=1 // pred_fallthru
      _
    // Predicated region
    $region14: #{bert_model_forward.7} parent=1 // pred_check
      _
    $region15: #{bert_model_forward.7} parent=1 // pred_check_branch
      %18 = sbr.rel (0) target = $region17
    $region16: #{bert_model_forward.7} parent=1 // pred_region
      _
    $region17: #{bert_model_forward.7} parent=1 // pred_fallthru
      _
    // Predicated region
    $region18: #{bert_model_forward.7} parent=1 // pred_check
      _
    $region19: #{bert_model_forward.7} parent=1 // pred_check_branch
      %20 = sbr.rel (0) target = $region21
    $region20: #{bert_model_forward.7} parent=1 // pred_region
      _
    $region21: #{bert_model_forward.7} parent=1 // pred_fallthru
      _
    %v22 = vld [vmem:[%s0] sm:$0x1]
    %v23 = vld [vmem:[%s1] sm:$0xf]
    %v24 = vld [vmem:[%s1 + $0x4] sm:$0xf]
    %v25 = vld [vmem:[%s1 + $0x8] sm:$0xf]
    %v26 = vld [vmem:[%s1 + $0xc] sm:$0xf]
    %v27 = vld [vmem:[%s2] sm:$0x1]
    %v29 = vperm.slane %v27, 0
    %v35 = vunpack.c.l.b16 %v23
    %v36 = vunpack.c.l.b16 %v24
    %v37 = vunpack.c.l.b16 %v25
    %v38 = vunpack.c.l.b16 %v26
    %v39 = vpack.c.b16 %v36, %v35
    %v40 = vpack.c.b16 %v38, %v37
    %vm43 = vcmask 261120
    %v45 = vsel %vm43, %v22, 0
    %47 = vmatpush.bf16.msra.mxu0 0
    %48 = vmatpush.bf16.msra.mxu0 0
    %49 = vmatpush.bf16.msra.mxu0 0
    %50 = vmatpush.bf16.msra.mxu0 0
    %51 = vmatpush.bf16.msra.mxu0 0
    %52 = vmatpush.bf16.msra.mxu0 0
    %53 = vmatpush.bf16.msra.mxu0 %v40
    %54 = vmatpush.bf16.msra.mxu0 %v39
    %55 = vmatmul.bf16.gmra.mxu0 %v45
    %v56 = vpop.f32.mrf.mxu0
    %v57 = vadd.f32 %v29, %v56
    %v58 = vpop.f32.mrf.mxu0
    %59 = vdwg.mxu0
    %v60 = vtanh.pop %v57
    %v61 = vpack.c.bf16 %v60, %v60
    %v62 = vld [vmem:[%s3] sm:$0xf]
    %v63 = vld [vmem:[%s3 + $0x4] sm:$0xf]
    %v64 = vld [vmem:[%s3 + $0x8] sm:$0xf]
    %v65 = vld [vmem:[%s3 + $0xc] sm:$0xf]
    %v66 = vld [vmem:[%s4] sm:$0x1]
    %v68 = vperm.slane %v66, 0
    %v74 = vunpack.c.l.b16 %v62
    %v75 = vunpack.c.l.b16 %v63
    %v76 = vunpack.c.l.b16 %v64
    %v77 = vunpack.c.l.b16 %v65
    %v78 = vpack.c.b16 %v75, %v74
    %v79 = vpack.c.b16 %v77, %v76
    %v83 = vsel %vm43, %v61, 0
    %85 = vmatpush.bf16.msra.mxu0 0
    %86 = vmatpush.bf16.msra.mxu0 0
    %87 = vmatpush.bf16.msra.mxu0 0
    %88 = vmatpush.bf16.msra.mxu0 0
    %89 = vmatpush.bf16.msra.mxu0 0
    %90 = vmatpush.bf16.msra.mxu0 0
    %91 = vmatpush.bf16.msra.mxu0 %v79
    %92 = vmatpush.bf16.msra.mxu0 %v78
    %93 = vmatmul.bf16.gmra.mxu0 %v83
    %v94 = vpop.f32.mrf.mxu0
    %v95 = vadd.f32 %v68, %v94
    %v96 = vpop.f32.mrf.mxu0
    %97 = vdwg.mxu0
    %vm98 = vcmask 9216
    %99 = vst.msk [vmem:[#allocation2] sm:$0x3] %vm98, %v95
    // Predicated region
    $region22: #{bert_model_forward.7} parent=1 // pred_check
      _
    $region23: #{bert_model_forward.7} parent=1 // pred_check_branch
      %101 = sbr.rel (0) target = $region25
    $region24: #{bert_model_forward.7} parent=1 // pred_region
      %103 = vsyncadd [#allocation3], 0
      %s105 = sshll.u32 [#allocation2], 4
      %s106 = int_to_ptr.vmem [resolvable:$true] %s105
      %s107 = sshll.u32 %s5, 4
      %s108 = int_to_ptr.hbm [resolvable:$true] %s107
      %110 = dma.vmem_to_hbm [thread:$0]  %s106, 32, %s108, [#allocation3]
    $region25: #{bert_model_forward.7} parent=1 // pred_fallthru
      _
    // Predicated region
    $region26: #{bert_model_forward.7} parent=1 // pred_check
      _
    $region27: #{bert_model_forward.7} parent=1 // pred_check_branch
      %112 = sbr.rel (0) target = $region29
    $region28: #{bert_model_forward.7} parent=1 // pred_region
      %114 = dma.done [#allocation3], 32
    $region29: #{bert_model_forward.7} parent=1 // pred_fallthru
      _
    %115 = vsyncpa [#allocation3], 1

// kernel: bert_model_forward.4
$region0: #{bert_model_forward.4}
  #allocation0 [shape = 'u32[]', space=smem, size = 0x4, offset = 0x4, fixed_abs, tag = 'smem constant byte address 0x4 - core index']
  #allocation1 [shape = 'u32[72,128]{1,0:T(1,128)}', space=vmem, size = 0x9000, scoped, tag = 'internal scratch']
  %s0 = inlined_call_operand.vmem [shape: bf16[2,8,32], index: 0, kind: input, shape index: {}]
  %s1 = inlined_call_operand.vmem [shape: bf16[32,96], index: 1, kind: input, shape index: {}]
  %s2 = inlined_call_operand.vmem [shape: f32[1,96], index: 2, kind: input, shape index: {}]
  %s3 = inlined_call_operand.vmem [shape: bf16[32,32], index: 3, kind: input, shape index: {}]
  %s4 = inlined_call_operand.vmem [shape: f32[1,32], index: 4, kind: input, shape index: {}]
  %s5 = inlined_call_operand.vmem [shape: f32[1,32], index: 5, kind: input, shape index: {}]
  %s6 = inlined_call_operand.vmem [shape: f32[1,32], index: 6, kind: input, shape index: {}]
  %s7 = inlined_call_operand.vmem [shape: bf16[32,64], index: 7, kind: input, shape index: {}]
  %s8 = inlined_call_operand.vmem [shape: f32[1,64], index: 8, kind: input, shape index: {}]
  %s9 = inlined_call_operand.vmem [shape: bf16[64,32], index: 9, kind: input, shape index: {}]
  %s10 = inlined_call_operand.vmem [shape: f32[1,32], index: 10, kind: input, shape index: {}]
  %s11 = inlined_call_operand.vmem [shape: f32[1,32], index: 11, kind: input, shape index: {}]
  %s12 = inlined_call_operand.vmem [shape: f32[1,32], index: 12, kind: input, shape index: {}]
  %s13 = inlined_call_operand.vmem [shape: bf16[2,8,32], index: 13, kind: output, shape index: {}]
  %s14 = sld [smem:[#allocation0]]
  $region85: #{bert_model_forward.4} parent=0
    _
  %s16 = ssub.s32 1, %s14
  %s17 = scalar_select 0, %s16, %s14
  loop: start=0, step=1, limit=4
  $region2: #{bert_model_forward.4} parent=0 // loop_pre_header
    _
  $region3: #{bert_model_forward.4} parent=0 // loop_header
    %s19 = sphi 0, %s23
    %p20 = scmp.ge.s32.totalorder %s19, 4
    %s29 = sphi 0, %s31
    %s32 = sphi 0, %s29
    %s33 = sphi 0, %s32
    %s49 = sphi 0, %s33
    %s53 = sphi 0, %s53
    %s55 = sphi 0, %s53
    %s56 = sphi 0, %s55
    %s70 = sphi 0, %s56
    %s74 = sphi 0, %s74
    %s76 = sphi 0, %s74
    %s77 = sphi 0, %s76
    %s91 = sphi 0, %s77
    %s95 = sphi 0, %s95
    %s97 = sphi 0, %s95
    %s98 = sphi 0, %s97
    %s112 = sphi 0, %s98
    %s116 = sphi 0, %s116
    %s118 = sphi 0, %s116
    %s119 = sphi 0, %s118
    %s133 = sphi 0, %s119
    %s137 = sphi 0, %s137
    %s139 = sphi 0, %s137
    %s140 = sphi 0, %s139
    %s154 = sphi 0, %s140
    %s158 = sphi 0, %s158
    %s160 = sphi 0, %s158
    %s161 = sphi 0, %s160
    %s175 = sphi 0, %s161
    %s179 = sphi 0, %s179
    %s181 = sphi 0, %s179
    %s182 = sphi 0, %s181
    %s196 = sphi 0, %s182
    %s200 = sphi 0, %s200
    %s202 = sphi 0, %s200
    %s203 = sphi 0, %s202
    %s217 = sphi 0, %s203
    %s221 = sphi 0, %s221
    %s223 = sphi 0, %s221
    %s224 = sphi 0, %s223
    %s238 = sphi 0, %s224
    %s242 = sphi 0, %s242
    %s244 = sphi 0, %s242
    %s245 = sphi 0, %s244
    %s259 = sphi 0, %s245
    %s263 = sphi 0, %s263
    %s265 = sphi 0, %s263
    %s266 = sphi 0, %s265
    %s280 = sphi 0, %s266
    %s284 = sphi 0, %s284
    %s286 = sphi 0, %s284
    %s287 = sphi 0, %s286
    %s301 = sphi 0, %s287
    %s307 = sphi 0, %s309
    %s310 = sphi 0, %s307
    %s311 = sphi 0, %s310
    %s327 = sphi 0, %s311
  $region4: #{bert_model_forward.4} parent=0 // loop_header_branch
    %22 = sbr.rel (%p20) target = $region8
  $region5: #{bert_model_forward.4} parent=0 // loop_body
    %s24 = ssub.s32 %s19, 1
    %s25 = ssub.s32 %s19, 2
    %s26 = sadd.s32 %s19, 1
    %s27 = ssub.s32 %s19, %s26
    %p28 = scmp.eq.s32.totalorder %s27, 0
    %s30 = sadd.s32 %s29, 1
    %s31 = scalar_select %p28, %s29, %s30
    %p34 = pneg %p28
    %p35 = scmp.eq.s32.totalorder %s19, 1
    %p36 = por %p34, %p35
    %p37 = scmp.ne.s32.totalorder %s29, %s32
    %p38 = scmp.eq.s32.totalorder %s19, 0
    %p39 = por %p37, %p38
    %p40 = scmp.ne.s32.totalorder %s29, %s32
    %p41 = scmp.eq.s32.totalorder %s24, 1
    %p42 = por %p40, %p41
    %p43 = scmp.ne.s32.totalorder %s32, %s33
    %p44 = scmp.eq.s32.totalorder %s24, 0
    %p45 = por %p43, %p44
    %p46 = scmp.ne.s32.totalorder %s32, %s33
    %p47 = scmp.eq.s32.totalorder %s25, 1
    %p48 = por %p46, %p47
    %p50 = scmp.ne.s32.totalorder %s33, %s49
    %p51 = scmp.eq.s32.totalorder %s25, 0
    %p52 = por %p50, %p51
    %s54 = sadd.s32 %s53, 1
    %p57 = scmp.eq.s32.totalorder %s19, 1
    %p58 = scmp.ne.s32.totalorder %s53, %s55
    %p59 = scmp.eq.s32.totalorder %s19, 0
    %p60 = por %p58, %p59
    %p61 = scmp.ne.s32.totalorder %s53, %s55
    %p62 = scmp.eq.s32.totalorder %s24, 1
    %p63 = por %p61, %p62
    %p64 = scmp.ne.s32.totalorder %s55, %s56
    %p65 = scmp.eq.s32.totalorder %s24, 0
    %p66 = por %p64, %p65
    %p67 = scmp.ne.s32.totalorder %s55, %s56
    %p68 = scmp.eq.s32.totalorder %s25, 1
    %p69 = por %p67, %p68
    %p71 = scmp.ne.s32.totalorder %s56, %s70
    %p72 = scmp.eq.s32.totalorder %s25, 0
    %p73 = por %p71, %p72
    %s75 = sadd.s32 %s74, 1
    %p78 = scmp.eq.s32.totalorder %s19, 1
    %p79 = scmp.ne.s32.totalorder %s74, %s76
    %p80 = scmp.eq.s32.totalorder %s19, 0
    %p81 = por %p79, %p80
    %p82 = scmp.ne.s32.totalorder %s74, %s76
    %p83 = scmp.eq.s32.totalorder %s24, 1
    %p84 = por %p82, %p83
    %p85 = scmp.ne.s32.totalorder %s76, %s77
    %p86 = scmp.eq.s32.totalorder %s24, 0
    %p87 = por %p85, %p86
    %p88 = scmp.ne.s32.totalorder %s76, %s77
    %p89 = scmp.eq.s32.totalorder %s25, 1
    %p90 = por %p88, %p89
    %p92 = scmp.ne.s32.totalorder %s77, %s91
    %p93 = scmp.eq.s32.totalorder %s25, 0
    %p94 = por %p92, %p93
    %s96 = sadd.s32 %s95, 1
    %p99 = scmp.eq.s32.totalorder %s19, 1
    %p100 = scmp.ne.s32.totalorder %s95, %s97
    %p101 = scmp.eq.s32.totalorder %s19, 0
    %p102 = por %p100, %p101
    %p103 = scmp.ne.s32.totalorder %s95, %s97
    %p104 = scmp.eq.s32.totalorder %s24, 1
    %p105 = por %p103, %p104
    %p106 = scmp.ne.s32.totalorder %s97, %s98
    %p107 = scmp.eq.s32.totalorder %s24, 0
    %p108 = por %p106, %p107
    %p109 = scmp.ne.s32.totalorder %s97, %s98
    %p110 = scmp.eq.s32.totalorder %s25, 1
    %p111 = por %p109, %p110
    %p113 = scmp.ne.s32.totalorder %s98, %s112
    %p114 = scmp.eq.s32.totalorder %s25, 0
    %p115 = por %p113, %p114
    %s117 = sadd.s32 %s116, 1
    %p120 = scmp.eq.s32.totalorder %s19, 1
    %p121 = scmp.ne.s32.totalorder %s116, %s118
    %p122 = scmp.eq.s32.totalorder %s19, 0
    %p123 = por %p121, %p122
    %p124 = scmp.ne.s32.totalorder %s116, %s118
    %p125 = scmp.eq.s32.totalorder %s24, 1
    %p126 = por %p124, %p125
    %p127 = scmp.ne.s32.totalorder %s118, %s119
    %p128 = scmp.eq.s32.totalorder %s24, 0
    %p129 = por %p127, %p128
    %p130 = scmp.ne.s32.totalorder %s118, %s119
    %p131 = scmp.eq.s32.totalorder %s25, 1
    %p132 = por %p130, %p131
    %p134 = scmp.ne.s32.totalorder %s119, %s133
    %p135 = scmp.eq.s32.totalorder %s25, 0
    %p136 = por %p134, %p135
    %s138 = sadd.s32 %s137, 1
    %p141 = scmp.eq.s32.totalorder %s19, 1
    %p142 = scmp.ne.s32.totalorder %s137, %s139
    %p143 = scmp.eq.s32.totalorder %s19, 0
    %p144 = por %p142, %p143
    %p145 = scmp.ne.s32.totalorder %s137, %s139
    %p146 = scmp.eq.s32.totalorder %s24, 1
    %p147 = por %p145, %p146
    %p148 = scmp.ne.s32.totalorder %s139, %s140
    %p149 = scmp.eq.s32.totalorder %s24, 0
    %p150 = por %p148, %p149
    %p151 = scmp.ne.s32.totalorder %s139, %s140
    %p152 = scmp.eq.s32.totalorder %s25, 1
    %p153 = por %p151, %p152
    %p155 = scmp.ne.s32.totalorder %s140, %s154
    %p156 = scmp.eq.s32.totalorder %s25, 0
    %p157 = por %p155, %p156
    %s159 = sadd.s32 %s158, 1
    %p162 = scmp.eq.s32.totalorder %s19, 1
    %p163 = scmp.ne.s32.totalorder %s158, %s160
    %p164 = scmp.eq.s32.totalorder %s19, 0
    %p165 = por %p163, %p164
    %p166 = scmp.ne.s32.totalorder %s158, %s160
    %p167 = scmp.eq.s32.totalorder %s24, 1
    %p168 = por %p166, %p167
    %p169 = scmp.ne.s32.totalorder %s160, %s161
    %p170 = scmp.eq.s32.totalorder %s24, 0
    %p171 = por %p169, %p170
    %p172 = scmp.ne.s32.totalorder %s160, %s161
    %p173 = scmp.eq.s32.totalorder %s25, 1
    %p174 = por %p172, %p173
    %p176 = scmp.ne.s32.totalorder %s161, %s175
    %p177 = scmp.eq.s32.totalorder %s25, 0
    %p178 = por %p176, %p177
    %s180 = sadd.s32 %s179, 1
    %p183 = scmp.eq.s32.totalorder %s19, 1
    %p184 = scmp.ne.s32.totalorder %s179, %s181
    %p185 = scmp.eq.s32.totalorder %s19, 0
    %p186 = por %p184, %p185
    %p187 = scmp.ne.s32.totalorder %s179, %s181
    %p188 = scmp.eq.s32.totalorder %s24, 1
    %p189 = por %p187, %p188
    %p190 = scmp.ne.s32.totalorder %s181, %s182
    %p191 = scmp.eq.s32.totalorder %s24, 0
    %p192 = por %p190, %p191
    %p193 = scmp.ne.s32.totalorder %s181, %s182
    %p194 = scmp.eq.s32.totalorder %s25, 1
    %p195 = por %p193, %p194
    %p197 = scmp.ne.s32.totalorder %s182, %s196
    %p198 = scmp.eq.s32.totalorder %s25, 0
    %p199 = por %p197, %p198
    %s201 = sadd.s32 %s200, 1
    %p204 = scmp.eq.s32.totalorder %s19, 1
    %p205 = scmp.ne.s32.totalorder %s200, %s202
    %p206 = scmp.eq.s32.totalorder %s19, 0
    %p207 = por %p205, %p206
    %p208 = scmp.ne.s32.totalorder %s200, %s202
    %p209 = scmp.eq.s32.totalorder %s24, 1
    %p210 = por %p208, %p209
    %p211 = scmp.ne.s32.totalorder %s202, %s203
    %p212 = scmp.eq.s32.totalorder %s24, 0
    %p213 = por %p211, %p212
    %p214 = scmp.ne.s32.totalorder %s202, %s203
    %p215 = scmp.eq.s32.totalorder %s25, 1
    %p216 = por %p214, %p215
    %p218 = scmp.ne.s32.totalorder %s203, %s217
    %p219 = scmp.eq.s32.totalorder %s25, 0
    %p220 = por %p218, %p219
    %s222 = sadd.s32 %s221, 1
    %p225 = scmp.eq.s32.totalorder %s19, 1
    %p226 = scmp.ne.s32.totalorder %s221, %s223
    %p227 = scmp.eq.s32.totalorder %s19, 0
    %p228 = por %p226, %p227
    %p229 = scmp.ne.s32.totalorder %s221, %s223
    %p230 = scmp.eq.s32.totalorder %s24, 1
    %p231 = por %p229, %p230
    %p232 = scmp.ne.s32.totalorder %s223, %s224
    %p233 = scmp.eq.s32.totalorder %s24, 0
    %p234 = por %p232, %p233
    %p235 = scmp.ne.s32.totalorder %s223, %s224
    %p236 = scmp.eq.s32.totalorder %s25, 1
    %p237 = por %p235, %p236
    %p239 = scmp.ne.s32.totalorder %s224, %s238
    %p240 = scmp.eq.s32.totalorder %s25, 0
    %p241 = por %p239, %p240
    %s243 = sadd.s32 %s242, 1
    %p246 = scmp.eq.s32.totalorder %s19, 1
    %p247 = scmp.ne.s32.totalorder %s242, %s244
    %p248 = scmp.eq.s32.totalorder %s19, 0
    %p249 = por %p247, %p248
    %p250 = scmp.ne.s32.totalorder %s242, %s244
    %p251 = scmp.eq.s32.totalorder %s24, 1
    %p252 = por %p250, %p251
    %p253 = scmp.ne.s32.totalorder %s244, %s245
    %p254 = scmp.eq.s32.totalorder %s24, 0
    %p255 = por %p253, %p254
    %p256 = scmp.ne.s32.totalorder %s244, %s245
    %p257 = scmp.eq.s32.totalorder %s25, 1
    %p258 = por %p256, %p257
    %p260 = scmp.ne.s32.totalorder %s245, %s259
    %p261 = scmp.eq.s32.totalorder %s25, 0
    %p262 = por %p260, %p261
    %s264 = sadd.s32 %s263, 1
    %p267 = scmp.eq.s32.totalorder %s19, 1
    %p268 = scmp.ne.s32.totalorder %s263, %s265
    %p269 = scmp.eq.s32.totalorder %s19, 0
    %p270 = por %p268, %p269
    %p271 = scmp.ne.s32.totalorder %s263, %s265
    %p272 = scmp.eq.s32.totalorder %s24, 1
    %p273 = por %p271, %p272
    %p274 = scmp.ne.s32.totalorder %s265, %s266
    %p275 = scmp.eq.s32.totalorder %s24, 0
    %p276 = por %p274, %p275
    %p277 = scmp.ne.s32.totalorder %s265, %s266
    %p278 = scmp.eq.s32.totalorder %s25, 1
    %p279 = por %p277, %p278
    %p281 = scmp.ne.s32.totalorder %s266, %s280
    %p282 = scmp.eq.s32.totalorder %s25, 0
    %p283 = por %p281, %p282
    %s285 = sadd.s32 %s284, 1
    %p288 = scmp.eq.s32.totalorder %s19, 1
    %p289 = scmp.ne.s32.totalorder %s284, %s286
    %p290 = scmp.eq.s32.totalorder %s19, 0
    %p291 = por %p289, %p290
    %p292 = scmp.ne.s32.totalorder %s284, %s286
    %p293 = scmp.eq.s32.totalorder %s24, 1
    %p294 = por %p292, %p293
    %p295 = scmp.ne.s32.totalorder %s286, %s287
    %p296 = scmp.eq.s32.totalorder %s24, 0
    %p297 = por %p295, %p296
    %p298 = scmp.ne.s32.totalorder %s286, %s287
    %p299 = scmp.eq.s32.totalorder %s25, 1
    %p300 = por %p298, %p299
    %p302 = scmp.ne.s32.totalorder %s287, %s301
    %p303 = scmp.eq.s32.totalorder %s25, 0
    %p304 = por %p302, %p303
    %s305 = ssub.s32 %s19, %s26
    %p306 = scmp.eq.s32.totalorder %s305, 0
    %s308 = sadd.s32 %s307, 1
    %s309 = scalar_select %p306, %s307, %s308
    %p312 = pneg %p306
    %p313 = scmp.eq.s32.totalorder %s19, 1
    %p314 = por %p312, %p313
    %p315 = scmp.ne.s32.totalorder %s307, %s310
    %p316 = scmp.eq.s32.totalorder %s19, 0
    %p317 = por %p315, %p316
    %p318 = scmp.ne.s32.totalorder %s307, %s310
    %p319 = scmp.eq.s32.totalorder %s24, 1
    %p320 = por %p318, %p319
    %p321 = scmp.ne.s32.totalorder %s310, %s311
    %p322 = scmp.eq.s32.totalorder %s24, 0
    %p323 = por %p321, %p322
    %p324 = scmp.ne.s32.totalorder %s310, %s311
    %p325 = scmp.eq.s32.totalorder %s25, 1
    %p326 = por %p324, %p325
    %p328 = scmp.ne.s32.totalorder %s311, %s327
    %p329 = scmp.eq.s32.totalorder %s25, 0
    %p330 = por %p328, %p329
    %p331 = scmp.le.s32.totalorder 1, %s19
    %p332 = scmp.lt.s32.totalorder %s19, 3
    %p333 = pnand %p331, %p332
    %p334 = pneg %p333
    // Predicated region
    $region9: #{bert_model_forward.4} parent=5 // pred_check
      _
    $region10: #{bert_model_forward.4} parent=5 // pred_check_branch
      %336 = sbr.rel (%p333) target = $region12
    $region11: #{bert_model_forward.4} parent=5 // pred_region
      %s337 = ssub.s32 %s19, 1
      // Predicated region
      $region13: #{bert_model_forward.4} parent=11 // pred_check
        %p338 = pneg %p66
      $region14: #{bert_model_forward.4} parent=11 // pred_check_branch
        %340 = sbr.rel (%p338) target = $region16
      $region15: #{bert_model_forward.4} parent=11 // pred_region
        _
      $region16: #{bert_model_forward.4} parent=11 // pred_fallthru
        _
      // Predicated region
      $region17: #{bert_model_forward.4} parent=11 // pred_check
        %p341 = pneg %p87
      $region18: #{bert_model_forward.4} parent=11 // pred_check_branch
        %343 = sbr.rel (%p341) target = $region20
      $region19: #{bert_model_forward.4} parent=11 // pred_region
        _
      $region20: #{bert_model_forward.4} parent=11 // pred_fallthru
        _
      // Predicated region
      $region21: #{bert_model_forward.4} parent=11 // pred_check
        %p344 = pneg %p108
      $region22: #{bert_model_forward.4} parent=11 // pred_check_branch
        %346 = sbr.rel (%p344) target = $region24
      $region23: #{bert_model_forward.4} parent=11 // pred_region
        _
      $region24: #{bert_model_forward.4} parent=11 // pred_fallthru
        _
      // Predicated region
      $region25: #{bert_model_forward.4} parent=11 // pred_check
        %p347 = pneg %p129
      $region26: #{bert_model_forward.4} parent=11 // pred_check_branch
        %349 = sbr.rel (%p347) target = $region28
      $region27: #{bert_model_forward.4} parent=11 // pred_region
        _
      $region28: #{bert_model_forward.4} parent=11 // pred_fallthru
        _
      // Predicated region
      $region29: #{bert_model_forward.4} parent=11 // pred_check
        %p350 = pneg %p150
      $region30: #{bert_model_forward.4} parent=11 // pred_check_branch
        %352 = sbr.rel (%p350) target = $region32
      $region31: #{bert_model_forward.4} parent=11 // pred_region
        _
      $region32: #{bert_model_forward.4} parent=11 // pred_fallthru
        _
      // Predicated region
      $region33: #{bert_model_forward.4} parent=11 // pred_check
        %p353 = pneg %p171
      $region34: #{bert_model_forward.4} parent=11 // pred_check_branch
        %355 = sbr.rel (%p353) target = $region36
      $region35: #{bert_model_forward.4} parent=11 // pred_region
        _
      $region36: #{bert_model_forward.4} parent=11 // pred_fallthru
        _
      // Predicated region
      $region37: #{bert_model_forward.4} parent=11 // pred_check
        %p356 = pneg %p192
      $region38: #{bert_model_forward.4} parent=11 // pred_check_branch
        %358 = sbr.rel (%p356) target = $region40
      $region39: #{bert_model_forward.4} parent=11 // pred_region
        _
      $region40: #{bert_model_forward.4} parent=11 // pred_fallthru
        _
      // Predicated region
      $region41: #{bert_model_forward.4} parent=11 // pred_check
        %p359 = pneg %p213
      $region42: #{bert_model_forward.4} parent=11 // pred_check_branch
        %361 = sbr.rel (%p359) target = $region44
      $region43: #{bert_model_forward.4} parent=11 // pred_region
        _
      $region44: #{bert_model_forward.4} parent=11 // pred_fallthru
        _
      // Predicated region
      $region45: #{bert_model_forward.4} parent=11 // pred_check
        %p362 = pneg %p234
      $region46: #{bert_model_forward.4} parent=11 // pred_check_branch
        %364 = sbr.rel (%p362) target = $region48
      $region47: #{bert_model_forward.4} parent=11 // pred_region
        _
      $region48: #{bert_model_forward.4} parent=11 // pred_fallthru
        _
      // Predicated region
      $region49: #{bert_model_forward.4} parent=11 // pred_check
        %p365 = pneg %p255
      $region50: #{bert_model_forward.4} parent=11 // pred_check_branch
        %367 = sbr.rel (%p365) target = $region52
      $region51: #{bert_model_forward.4} parent=11 // pred_region
        _
      $region52: #{bert_model_forward.4} parent=11 // pred_fallthru
        _
      // Predicated region
      $region53: #{bert_model_forward.4} parent=11 // pred_check
        %p368 = pneg %p276
      $region54: #{bert_model_forward.4} parent=11 // pred_check_branch
        %370 = sbr.rel (%p368) target = $region56
      $region55: #{bert_model_forward.4} parent=11 // pred_region
        _
      $region56: #{bert_model_forward.4} parent=11 // pred_fallthru
        _
      // Predicated region
      $region57: #{bert_model_forward.4} parent=11 // pred_check
        %p371 = pneg %p297
      $region58: #{bert_model_forward.4} parent=11 // pred_check_branch
        %373 = sbr.rel (%p371) target = $region60
      $region59: #{bert_model_forward.4} parent=11 // pred_region
        _
      $region60: #{bert_model_forward.4} parent=11 // pred_fallthru
        _
    $region12: #{bert_model_forward.4} parent=5 // pred_fallthru
      _
    %p374 = scmp.lt.s32.totalorder %s19, 2
    // Predicated region
    $region61: #{bert_model_forward.4} parent=5 // pred_check
      %p375 = pneg %p374
    $region62: #{bert_model_forward.4} parent=5 // pred_check_branch
      %377 = sbr.rel (%p375) target = $region64
    $region63: #{bert_model_forward.4} parent=5 // pred_region
      // Predicated region
      $region65: #{bert_model_forward.4} parent=63 // pred_check
        %p378 = pneg %p39
      $region66: #{bert_model_forward.4} parent=63 // pred_check_branch
        %380 = sbr.rel (%p378) target = $region68
      $region67: #{bert_model_forward.4} parent=63 // pred_region
        %p381 = scmp.lt.s32.totalorder %s19, 1
        %s382 = scalar_select %p381, %s19, 1
        %s383 = smul.addr %s382, 4
        %s384 = scalar_lea.vmem %s0, %s383
      $region68: #{bert_model_forward.4} parent=63 // pred_fallthru
        _
    $region64: #{bert_model_forward.4} parent=5 // pred_fallthru
      _
    %p385 = scmp.le.s32.totalorder 1, %s19
    %p386 = scmp.lt.s32.totalorder %s19, 3
    %p387 = pnand %p385, %p386
    %p388 = pneg %p387
    // Predicated region
    $region69: #{bert_model_forward.4} parent=5 // pred_check
      _
    $region70: #{bert_model_forward.4} parent=5 // pred_check_branch
      %390 = sbr.rel (%p387) target = $region72
    $region71: #{bert_model_forward.4} parent=5 // pred_region
      %s391 = ssub.s32 %s19, 1
      %p392 = scmp.lt.s32.totalorder %s24, 1
      %s393 = scalar_select %p392, %s24, 1
      %s394 = smul.addr %s393, 4
      %s395 = scalar_lea.vmem %s0, %s394
      %p396 = pneg %p45
      %p397 = pneg %p42
      %p398 = pneg %p66
      %p399 = pneg %p63
      %p400 = pneg %p87
      %p401 = pneg %p84
      %p402 = pneg %p108
      %p403 = pneg %p105
      %p404 = pneg %p129
      %p405 = pneg %p126
      %p406 = pneg %p150
      %p407 = pneg %p147
      %p408 = pneg %p171
      %p409 = pneg %p168
      %p410 = pneg %p192
      %p411 = pneg %p189
      %p412 = pneg %p213
      %p413 = pneg %p210
      %p414 = pneg %p234
      %p415 = pneg %p231
      %p416 = pneg %p255
      %p417 = pneg %p252
      %p418 = pneg %p276
      %p419 = pneg %p273
      %p420 = pneg %p297
      %p421 = pneg %p294
      %p422 = pneg %p323
      %p423 = pneg %p320
      %p424 = scmp.lt.s32.totalorder %s24, 1
      %s425 = scalar_select %p424, %s24, 1
      %s426 = smul.addr %s425, 4
      %s427 = scalar_lea.vmem %s13, %s426
      %p428 = scmp.lt.s32.totalorder %s24, 1
      %s429 = scalar_select %p428, %s24, 1
      %s430 = smul.addr %s429, 4
      %s431 = scalar_lea.vmem %s0, %s430
      %p432 = scmp.lt.s32.totalorder %s24, 1
      %s433 = scalar_select %p432, %s24, 1
      %s434 = smul.addr %s433, 4
      %s435 = scalar_lea.vmem %s13, %s434
      %v437 = vld [vmem:[%s431] sm:$0xf]
      %v438 = vld [vmem:[%s1] sm:$0xf]
      %v439 = vld [vmem:[%s1 + $0x4] sm:$0xf]
      %v440 = vld [vmem:[%s1 + $0x8] sm:$0xf]
      %v441 = vld [vmem:[%s1 + $0xc] sm:$0xf]
      %v442 = vld [vmem:[%s2] sm:$0x1]
      %v444 = vperm.slane %v442, 0
      %v450 = vunpack.c.l.b16 %v438
      %v451 = vunpack.c.l.b16 %v439
      %v452 = vunpack.c.l.b16 %v440
      %v453 = vunpack.c.l.b16 %v441
      %v454 = vpack.c.b16 %v451, %v450
      %v455 = vpack.c.b16 %v453, %v452
      %vm458 = vcmask 261120
      %v460 = vsel %vm458, %v437, 0
      %462 = vmatpush.bf16.msra.mxu0 0
      %463 = vmatpush.bf16.msra.mxu0 0
      %464 = vmatpush.bf16.msra.mxu0 0
      %465 = vmatpush.bf16.msra.mxu0 0
      %466 = vmatpush.bf16.msra.mxu0 0
      %467 = vmatpush.bf16.msra.mxu0 0
      %468 = vmatpush.bf16.msra.mxu0 %v455
      %469 = vmatpush.bf16.msra.mxu0 %v454
      %470 = vmatmul.bf16.gmra.mxu0 %v460
      %v471 = vpop.f32.mrf.mxu0
      %v472 = vadd.f32 %v444, %v471
      %v473 = vpop.f32.mrf.mxu0
      %474 = vdwg.mxu0
      %v475 = vmul.f32 %v472, 0.35355338
      %v476 = vpack.c.bf16 %v475, %v475
      %v477 = vpack.c.bf16 %v472, %v472
      %479 = vrot.lane.b32.xlu0 %v477, 96
      %v480 = vpop.permute.xlu0 %479
      %vm481 = vcmask 64512
      %v483 = vsel %vm481, %v476, 0
      %v486 = vsel %vm481, %v480, 0
      %488 = vmatpush.bf16.xpose.msra.mxu0 0
      %489 = vmatpush.bf16.xpose.msra.mxu0 0
      %490 = vmatpush.bf16.xpose.msra.mxu0 0
      %491 = vmatpush.bf16.xpose.msra.mxu0 0
      %492 = vmatpush.bf16.xpose.msra.mxu0 0
      %493 = vmatpush.bf16.xpose.msra.mxu0 0
      %494 = vmatpush.bf16.xpose.msra.mxu0 0
      %495 = vmatpush.bf16.xpose.msra.mxu0 %v486
      %496 = vmatmul.bf16.gmra.mxu0 %v483
      %v497 = vpop.f32.mrf.mxu0
      %v498 = vadd.f32 0.0, %v497
      %v499 = vpop.f32.mrf.mxu0
      %500 = vdwg.mxu0
      %v501 = vsel %vm481, %v498, -inf
      %502 = vmax.xlane.f32.xlu0 %v501
      %v503 = vpop.xlane.xlu0 %502
      %v504 = vsub.f32 %v498, %v503
      %v505 = vmul.f32 %v504, 1.442695
      %v506 = vpow.pop %v505
      %v507 = vsel %vm481, %v506, 0.0
      %508 = vadd.xlane.f32.xlu0 %v507
      %v509 = vpop.xlane.xlu0 %508
      %v510 = vrcp.pop %v509
      %v511 = vmul.f32 %v506, %v510
      %v512 = vpack.c.bf16 %v511, %v511
      %513 = vrot.lane.b32.xlu0 %v477, 64
      %v514 = vpop.permute.xlu0 %513
      %v516 = vsel %vm481, %v512, 0
      %vm518 = vcmask 1043456
      %v520 = vsel %vm518, %v514, 0
      %522 = vmatpush.bf16.msra.mxu0 0
      %523 = vmatpush.bf16.msra.mxu0 0
      %524 = vmatpush.bf16.msra.mxu0 0
      %525 = vmatpush.bf16.msra.mxu0 0
      %526 = vmatpush.bf16.msra.mxu0 0
      %527 = vmatpush.bf16.msra.mxu0 0
      %528 = vmatpush.bf16.msra.mxu0 0
      %529 = vmatpush.bf16.msra.mxu0 %v520
      %530 = vmatmul.bf16.gmra.mxu0 %v516
      %v531 = vpop.f32.mrf.mxu0
      %v532 = vadd.f32 0.0, %v531
      %v533 = vpop.f32.mrf.mxu0
      %534 = vdwg.mxu0
      %536 = vrot.lane.b32.xlu0 %v476, 120
      %v537 = vpop.permute.xlu0 %536
      %538 = vrot.lane.b32.xlu0 %v477, 88
      %v539 = vpop.permute.xlu0 %538
      %v541 = vsel %vm481, %v537, 0
      %v544 = vsel %vm481, %v539, 0
      %546 = vmatpush.bf16.xpose.msra.mxu0 0
      %547 = vmatpush.bf16.xpose.msra.mxu0 0
      %548 = vmatpush.bf16.xpose.msra.mxu0 0
      %549 = vmatpush.bf16.xpose.msra.mxu0 0
      %550 = vmatpush.bf16.xpose.msra.mxu0 0
      %551 = vmatpush.bf16.xpose.msra.mxu0 0
      %552 = vmatpush.bf16.xpose.msra.mxu0 0
      %553 = vmatpush.bf16.xpose.msra.mxu0 %v544
      %554 = vmatmul.bf16.gmra.mxu0 %v541
      %v555 = vpop.f32.mrf.mxu0
      %v556 = vadd.f32 0.0, %v555
      %v557 = vpop.f32.mrf.mxu0
      %558 = vdwg.mxu0
      %v559 = vsel %vm481, %v556, -inf
      %560 = vmax.xlane.f32.xlu0 %v559
      %v561 = vpop.xlane.xlu0 %560
      %v562 = vsub.f32 %v556, %v561
      %v563 = vmul.f32 %v562, 1.442695
      %v564 = vpow.pop %v563
      %v565 = vsel %vm481, %v564, 0.0
      %566 = vadd.xlane.f32.xlu0 %v565
      %v567 = vpop.xlane.xlu0 %566
      %v568 = vrcp.pop %v567
      %v569 = vmul.f32 %v564, %v568
      %v570 = vpack.c.bf16 %v569, %v569
      %571 = vrot.lane.b32.xlu0 %v477, 56
      %v572 = vpop.permute.xlu0 %571
      %v574 = vsel %vm481, %v570, 0
      %v577 = vsel %vm518, %v572, 0
      %579 = vmatpush.bf16.msra.mxu0 0
      %580 = vmatpush.bf16.msra.mxu0 0
      %581 = vmatpush.bf16.msra.mxu0 0
      %582 = vmatpush.bf16.msra.mxu0 0
      %583 = vmatpush.bf16.msra.mxu0 0
      %584 = vmatpush.bf16.msra.mxu0 0
      %585 = vmatpush.bf16.msra.mxu0 0
      %586 = vmatpush.bf16.msra.mxu0 %v577
      %587 = vmatmul.bf16.gmra.mxu0 %v574
      %v588 = vpop.f32.mrf.mxu0
      %v589 = vadd.f32 0.0, %v588
      %v590 = vpop.f32.mrf.mxu0
      %591 = vdwg.mxu0
      %592 = vrot.lane.b32.xlu0 %v476, 112
      %v593 = vpop.permute.xlu0 %592
      %594 = vrot.lane.b32.xlu0 %v477, 80
      %v595 = vpop.permute.xlu0 %594
      %v597 = vsel %vm481, %v593, 0
      %v600 = vsel %vm481, %v595, 0
      %602 = vmatpush.bf16.xpose.msra.mxu0 0
      %603 = vmatpush.bf16.xpose.msra.mxu0 0
      %604 = vmatpush.bf16.xpose.msra.mxu0 0
      %605 = vmatpush.bf16.xpose.msra.mxu0 0
      %606 = vmatpush.bf16.xpose.msra.mxu0 0
      %607 = vmatpush.bf16.xpose.msra.mxu0 0
      %608 = vmatpush.bf16.xpose.msra.mxu0 0
      %609 = vmatpush.bf16.xpose.msra.mxu0 %v600
      %610 = vmatmul.bf16.gmra.mxu0 %v597
      %v611 = vpop.f32.mrf.mxu0
      %v612 = vadd.f32 0.0, %v611
      %v613 = vpop.f32.mrf.mxu0
      %614 = vdwg.mxu0
      %v615 = vsel %vm481, %v612, -inf
      %616 = vmax.xlane.f32.xlu0 %v615
      %v617 = vpop.xlane.xlu0 %616
      %v618 = vsub.f32 %v612, %v617
      %v619 = vmul.f32 %v618, 1.442695
      %v620 = vpow.pop %v619
      %v621 = vsel %vm481, %v620, 0.0
      %622 = vadd.xlane.f32.xlu0 %v621
      %v623 = vpop.xlane.xlu0 %622
      %v624 = vrcp.pop %v623
      %v625 = vmul.f32 %v620, %v624
      %v626 = vpack.c.bf16 %v625, %v625
      %627 = vrot.lane.b32.xlu0 %v477, 48
      %v628 = vpop.permute.xlu0 %627
      %v630 = vsel %vm481, %v626, 0
      %v633 = vsel %vm518, %v628, 0
      %635 = vmatpush.bf16.msra.mxu0 0
      %636 = vmatpush.bf16.msra.mxu0 0
      %637 = vmatpush.bf16.msra.mxu0 0
      %638 = vmatpush.bf16.msra.mxu0 0
      %639 = vmatpush.bf16.msra.mxu0 0
      %640 = vmatpush.bf16.msra.mxu0 0
      %641 = vmatpush.bf16.msra.mxu0 0
      %642 = vmatpush.bf16.msra.mxu0 %v633
      %643 = vmatmul.bf16.gmra.mxu0 %v630
      %v644 = vpop.f32.mrf.mxu0
      %v645 = vadd.f32 0.0, %v644
      %v646 = vpop.f32.mrf.mxu0
      %647 = vdwg.mxu0
      %648 = vrot.lane.b32.xlu0 %v476, 104
      %v649 = vpop.permute.xlu0 %648
      %650 = vrot.lane.b32.xlu0 %v477, 72
      %v651 = vpop.permute.xlu0 %650
      %v653 = vsel %vm481, %v649, 0
      %v656 = vsel %vm481, %v651, 0
      %658 = vmatpush.bf16.xpose.msra.mxu0 0
      %659 = vmatpush.bf16.xpose.msra.mxu0 0
      %660 = vmatpush.bf16.xpose.msra.mxu0 0
      %661 = vmatpush.bf16.xpose.msra.mxu0 0
      %662 = vmatpush.bf16.xpose.msra.mxu0 0
      %663 = vmatpush.bf16.xpose.msra.mxu0 0
      %664 = vmatpush.bf16.xpose.msra.mxu0 0
      %665 = vmatpush.bf16.xpose.msra.mxu0 %v656
      %666 = vmatmul.bf16.gmra.mxu0 %v653
      %v667 = vpop.f32.mrf.mxu0
      %v668 = vadd.f32 0.0, %v667
      %v669 = vpop.f32.mrf.mxu0
      %670 = vdwg.mxu0
      %v671 = vsel %vm481, %v668, -inf
      %672 = vmax.xlane.f32.xlu0 %v671
      %v673 = vpop.xlane.xlu0 %672
      %v674 = vsub.f32 %v668, %v673
      %v675 = vmul.f32 %v674, 1.442695
      %v676 = vpow.pop %v675
      %v677 = vsel %vm481, %v676, 0.0
      %678 = vadd.xlane.f32.xlu0 %v677
      %v679 = vpop.xlane.xlu0 %678
      %v680 = vrcp.pop %v679
      %v681 = vmul.f32 %v676, %v680
      %v682 = vpack.c.bf16 %v681, %v681
      %683 = vrot.lane.b32.xlu0 %v477, 40
      %v684 = vpop.permute.xlu0 %683
      %v686 = vsel %vm481, %v682, 0
      %v689 = vsel %vm518, %v684, 0
      %691 = vmatpush.bf16.msra.mxu0 0
      %692 = vmatpush.bf16.msra.mxu0 0
      %693 = vmatpush.bf16.msra.mxu0 0
      %694 = vmatpush.bf16.msra.mxu0 0
      %695 = vmatpush.bf16.msra.mxu0 0
      %696 = vmatpush.bf16.msra.mxu0 0
      %697 = vmatpush.bf16.msra.mxu0 0
      %698 = vmatpush.bf16.msra.mxu0 %v689
      %699 = vmatmul.bf16.gmra.mxu0 %v686
      %v700 = vpop.f32.mrf.mxu0
      %v701 = vadd.f32 0.0, %v700
      %v702 = vpop.f32.mrf.mxu0
      %703 = vdwg.mxu0
      %705 = vrot.lane.b32.xlu0 %v589, 8
      %v706 = vpop.permute.xlu0 %705
      %709 = vrot.lane.b32.xlu0 %v645, 16
      %v710 = vpop.permute.xlu0 %709
      %713 = vrot.lane.b32.xlu0 %v701, 24
      %v714 = vpop.permute.xlu0 %713
      %v716 = vsel %vm481, %v532, %v706
      %vm717 = vcmask 130048
      %v718 = vsel %vm717, %v716, %v710
      %vm719 = vcmask 195584
      %v720 = vsel %vm719, %v718, %v714
      %v721 = vpack.c.bf16 %v720, %v720
      %v722 = vld [vmem:[%s3] sm:$0xf]
      %v723 = vld [vmem:[%s3 + $0x4] sm:$0xf]
      %v724 = vld [vmem:[%s3 + $0x8] sm:$0xf]
      %v725 = vld [vmem:[%s3 + $0xc] sm:$0xf]
      %v726 = vld [vmem:[%s4] sm:$0x1]
      %v728 = vperm.slane %v726, 0
      %v734 = vunpack.c.l.b16 %v722
      %v735 = vunpack.c.l.b16 %v723
      %v736 = vunpack.c.l.b16 %v724
      %v737 = vunpack.c.l.b16 %v725
      %v738 = vpack.c.b16 %v735, %v734
      %v739 = vpack.c.b16 %v737, %v736
      %v743 = vsel %vm458, %v721, 0
      %745 = vmatpush.bf16.msra.mxu0 0
      %746 = vmatpush.bf16.msra.mxu0 0
      %747 = vmatpush.bf16.msra.mxu0 0
      %748 = vmatpush.bf16.msra.mxu0 0
      %749 = vmatpush.bf16.msra.mxu0 0
      %750 = vmatpush.bf16.msra.mxu0 0
      %751 = vmatpush.bf16.msra.mxu0 %v739
      %752 = vmatpush.bf16.msra.mxu0 %v738
      %753 = vmatmul.bf16.gmra.mxu0 %v743
      %v754 = vpop.f32.mrf.mxu0
      %v755 = vadd.f32 %v728, %v754
      %v756 = vpop.f32.mrf.mxu0
      %757 = vdwg.mxu0
      %v758 = vunpack.c.l.bf16 %v437
      %v759 = vadd.f32 %v758, %v755
      %v760 = vld [vmem:[%s5] sm:$0x1]
      %v761 = vld [vmem:[%s6] sm:$0x1]
      %v762 = vsel %vm458, %v759, 0.0
      %763 = vadd.xlane.f32.xlu0 %v762
      %v764 = vpop.xlane.xlu0 %763
      %v765 = vrcp.pop 32.0
      %v766 = vmul.f32 32.0, %v765
      %v767 = vsub.f32 1.0, %v766
      %v768 = vmul.f32 %v765, %v767
      %v769 = vadd.f32 %v765, %v768
      %vm770 = vweird.f32 %v765
      %v771 = vsel %vm770, %v765, %v769
      %v772 = vmul.f32 %v764, %v771
      %v773 = vsub.f32 %v759, %v772
      %v774 = vmul.f32 %v773, %v773
      %v775 = vsel %vm458, %v774, 0.0
      %776 = vadd.xlane.f32.xlu0 %v775
      %v777 = vpop.xlane.xlu0 %776
      %v778 = vmul.f32 %v777, %v771
      %v779 = vadd.f32 %v778, 1e-05
      %v780 = vrsqrt.pop %v779
      %v781 = vmul.f32 %v780, %v779
      %v782 = vmul.f32 %v781, %v780
      %v783 = vmul.f32 0.5, %v782
      %v784 = vsub.f32 1.5, %v783
      %v785 = vmul.f32 %v780, %v784
      %vm786 = vweird.f32 %v779
      %vm787 = vweird.f32 %v780
      %vm788 = vmor %vm786, %vm787
      %v789 = vsel %vm788, %v780, %v785
      %v790 = vmul.f32 %v773, %v789
      %v792 = vperm.slane %v760, 0
      %v794 = vmul.f32 %v790, %v792
      %v796 = vperm.slane %v761, 0
      %v798 = vadd.f32 %v794, %v796
      %v799 = vpack.c.bf16 %v798, %v798
      %v800 = vld [vmem:[%s7] sm:$0xf]
      %v801 = vld [vmem:[%s7 + $0x4] sm:$0xf]
      %v802 = vld [vmem:[%s7 + $0x8] sm:$0xf]
      %v803 = vld [vmem:[%s7 + $0xc] sm:$0xf]
      %v804 = vld [vmem:[%s8] sm:$0x1]
      %v806 = vperm.slane %v804, 0
      %v812 = vunpack.c.l.b16 %v800
      %v813 = vunpack.c.l.b16 %v801
      %v814 = vunpack.c.l.b16 %v802
      %v815 = vunpack.c.l.b16 %v803
      %v816 = vpack.c.b16 %v813, %v812
      %v817 = vpack.c.b16 %v815, %v814
      %v821 = vsel %vm458, %v799, 0
      %823 = vmatpush.bf16.msra.mxu0 0
      %824 = vmatpush.bf16.msra.mxu0 0
      %825 = vmatpush.bf16.msra.mxu0 0
      %826 = vmatpush.bf16.msra.mxu0 0
      %827 = vmatpush.bf16.msra.mxu0 0
      %828 = vmatpush.bf16.msra.mxu0 0
      %829 = vmatpush.bf16.msra.mxu0 %v817
      %830 = vmatpush.bf16.msra.mxu0 %v816
      %831 = vmatmul.bf16.gmra.mxu0 %v821
      %v832 = vpop.f32.mrf.mxu0
      %v833 = vadd.f32 %v806, %v832
      %v834 = vpop.f32.mrf.mxu0
      %835 = vdwg.mxu0
      %v836 = vmax.f32 %v833, 0.0
      %v837 = vpack.c.bf16 %v836, %v836
      %v838 = vld [vmem:[%s9] sm:$0xf]
      %v839 = vld [vmem:[%s9 + $0x4] sm:$0xf]
      %v840 = vld [vmem:[%s9 + $0x8] sm:$0xf]
      %v841 = vld [vmem:[%s9 + $0xc] sm:$0xf]
      %v842 = vld [vmem:[%s9 + $0x10] sm:$0xf]
      %v843 = vld [vmem:[%s9 + $0x14] sm:$0xf]
      %v844 = vld [vmem:[%s9 + $0x18] sm:$0xf]
      %v845 = vld [vmem:[%s9 + $0x1c] sm:$0xf]
      %v846 = vld [vmem:[%s10] sm:$0x1]
      %v848 = vperm.slane %v846, 0
      %v858 = vunpack.c.l.b16 %v838
      %v859 = vunpack.c.l.b16 %v839
      %v860 = vunpack.c.l.b16 %v840
      %v861 = vunpack.c.l.b16 %v841
      %v862 = vunpack.c.l.b16 %v842
      %v863 = vunpack.c.l.b16 %v843
      %v864 = vunpack.c.l.b16 %v844
      %v865 = vunpack.c.l.b16 %v845
      %v866 = vpack.c.b16 %v859, %v858
      %v867 = vpack.c.b16 %v861, %v860
      %v868 = vpack.c.b16 %v863, %v862
      %v869 = vpack.c.b16 %v865, %v864
      %vm874 = vcmask 523264
      %v876 = vsel %vm874, %v837, 0
      %878 = vmatpush.bf16.msra.mxu0 0
      %879 = vmatpush.bf16.msra.mxu0 0
      %880 = vmatpush.bf16.msra.mxu0 0
      %881 = vmatpush.bf16.msra.mxu0 0
      %882 = vmatpush.bf16.msra.mxu0 %v869
      %883 = vmatpush.bf16.msra.mxu0 %v868
      %884 = vmatpush.bf16.msra.mxu0 %v867
      %885 = vmatpush.bf16.msra.mxu0 %v866
      %886 = vmatmul.bf16.gmra.mxu0 %v876
      %v887 = vpop.f32.mrf.mxu0
      %v888 = vadd.f32 %v848, %v887
      %v889 = vpop.f32.mrf.mxu0
      %890 = vdwg.mxu0
      %v891 = vadd.f32 %v798, %v888
      %v892 = vld [vmem:[%s11] sm:$0x1]
      %v893 = vld [vmem:[%s12] sm:$0x1]
      %v894 = vsel %vm458, %v891, 0.0
      %895 = vadd.xlane.f32.xlu0 %v894
      %v896 = vpop.xlane.xlu0 %895
      %v897 = vmul.f32 %v896, %v771
      %v898 = vsub.f32 %v891, %v897
      %v899 = vmul.f32 %v898, %v898
      %v900 = vsel %vm458, %v899, 0.0
      %901 = vadd.xlane.f32.xlu0 %v900
      %v902 = vpop.xlane.xlu0 %901
      %v903 = vmul.f32 %v902, %v771
      %v904 = vadd.f32 %v903, 1e-05
      %v905 = vrsqrt.pop %v904
      %v906 = vmul.f32 %v905, %v904
      %v907 = vmul.f32 %v906, %v905
      %v908 = vmul.f32 0.5, %v907
      %v909 = vsub.f32 1.5, %v908
      %v910 = vmul.f32 %v905, %v909
      %vm911 = vweird.f32 %v904
      %vm912 = vweird.f32 %v905
      %vm913 = vmor %vm911, %vm912
      %v914 = vsel %vm913, %v905, %v910
      %v915 = vmul.f32 %v898, %v914
      %v917 = vperm.slane %v892, 0
      %v919 = vmul.f32 %v915, %v917
      %v921 = vperm.slane %v893, 0
      %v923 = vadd.f32 %v919, %v921
      %v924 = vpack.c.bf16 %v923, %v923
      %vm925 = vcmask 257024
      %926 = vst.msk [vmem:[%s435] sm:$0xf] %vm925, %v924
      %p927 = scmp.lt.s32.totalorder %s24, 1
      %s928 = scalar_select %p927, %s24, 1
      %s929 = smul.addr %s928, 4
      %s930 = scalar_lea.vmem %s13, %s929
      // Predicated region
      $region73: #{bert_model_forward.4} parent=71 // pred_check
        %p931 = pneg %p320
      $region74: #{bert_model_forward.4} parent=71 // pred_check_branch
        %933 = sbr.rel (%p931) target = $region76
      $region75: #{bert_model_forward.4} parent=71 // pred_region
        _
      $region76: #{bert_model_forward.4} parent=71 // pred_fallthru
        _
    $region72: #{bert_model_forward.4} parent=5 // pred_fallthru
      _
    %p934 = scmp.le.s32.totalorder 2, %s19
    // Predicated region
    $region77: #{bert_model_forward.4} parent=5 // pred_check
      %p935 = pneg %p934
    $region78: #{bert_model_forward.4} parent=5 // pred_check_branch
      %937 = sbr.rel (%p935) target = $region80
    $region79: #{bert_model_forward.4} parent=5 // pred_region
      %s938 = ssub.s32 %s19, 2
      // Predicated region
      $region81: #{bert_model_forward.4} parent=79 // pred_check
        %p939 = pneg %p326
      $region82: #{bert_model_forward.4} parent=79 // pred_check_branch
        %941 = sbr.rel (%p939) target = $region84
      $region83: #{bert_model_forward.4} parent=79 // pred_region
        %p942 = scmp.lt.s32.totalorder %s25, 1
        %s943 = scalar_select %p942, %s25, 1
        %s944 = smul.addr %s943, 4
        %s945 = scalar_lea.vmem %s13, %s944
      $region84: #{bert_model_forward.4} parent=79 // pred_fallthru
        _
    $region80: #{bert_model_forward.4} parent=5 // pred_fallthru
      _
  $region6: #{bert_model_forward.4} parent=0 // loop_footer
    %s23 = sadd.s32 1, %s19
  $region7: #{bert_model_forward.4} parent=0 // loop_footer_branch
    %18 = sbr.rel target = $region3
  $region8: #{bert_model_forward.4} parent=0 // loop_exit
    _

// kernel: bert_model_forward.6
$region0: #{bert_model_forward.6}
  #allocation0 [shape = 'u32[]', space=smem, size = 0x4, offset = 0x4, fixed_abs, tag = 'smem constant byte address 0x4 - core index']
  #allocation1 [shape = 'u32[72,128]{1,0:T(1,128)}', space=vmem, size = 0x9000, scoped, tag = 'internal scratch']
  %s0 = inlined_call_operand.vmem [shape: bf16[6,32], index: 0, kind: input, shape index: {}]
  %s1 = inlined_call_operand.vmem [shape: bf16[32,32], index: 1, kind: input, shape index: {}]
  %s2 = inlined_call_operand.vmem [shape: f32[1,32], index: 2, kind: input, shape index: {}]
  %s3 = inlined_call_operand.vmem [shape: f32[1,32], index: 3, kind: input, shape index: {}]
  %s4 = inlined_call_operand.vmem [shape: f32[1,32], index: 4, kind: input, shape index: {}]
  %s5 = inlined_call_operand.vmem [shape: bf16[32,128], index: 5, kind: input, shape index: {}]
  %s6 = inlined_call_operand.vmem [shape: f32[1,128], index: 6, kind: input, shape index: {}]
  %s7 = inlined_call_operand.vmem [shape: f32[6,128], index: 7, kind: output, shape index: {}]
  %s8 = sld [smem:[#allocation0]]
  $region38: #{bert_model_forward.6} parent=0
    _
  %s10 = ssub.s32 1, %s8
  %s11 = scalar_select 0, %s10, %s8
  // Predicated region
  $region2: #{bert_model_forward.6} parent=0 // pred_check
    _
  $region3: #{bert_model_forward.6} parent=0 // pred_check_branch
    %13 = sbr.rel (0) target = $region5
  $region4: #{bert_model_forward.6} parent=0 // pred_region
    _
  $region5: #{bert_model_forward.6} parent=0 // pred_fallthru
    _
  // Predicated region
  $region6: #{bert_model_forward.6} parent=0 // pred_check
    _
  $region7: #{bert_model_forward.6} parent=0 // pred_check_branch
    %15 = sbr.rel (0) target = $region9
  $region8: #{bert_model_forward.6} parent=0 // pred_region
    _
  $region9: #{bert_model_forward.6} parent=0 // pred_fallthru
    _
  // Predicated region
  $region10: #{bert_model_forward.6} parent=0 // pred_check
    _
  $region11: #{bert_model_forward.6} parent=0 // pred_check_branch
    %17 = sbr.rel (0) target = $region13
  $region12: #{bert_model_forward.6} parent=0 // pred_region
    _
  $region13: #{bert_model_forward.6} parent=0 // pred_fallthru
    _
  // Predicated region
  $region14: #{bert_model_forward.6} parent=0 // pred_check
    _
  $region15: #{bert_model_forward.6} parent=0 // pred_check_branch
    %19 = sbr.rel (0) target = $region17
  $region16: #{bert_model_forward.6} parent=0 // pred_region
    _
  $region17: #{bert_model_forward.6} parent=0 // pred_fallthru
    _
  // Predicated region
  $region18: #{bert_model_forward.6} parent=0 // pred_check
    _
  $region19: #{bert_model_forward.6} parent=0 // pred_check_branch
    %21 = sbr.rel (0) target = $region21
  $region20: #{bert_model_forward.6} parent=0 // pred_region
    _
  $region21: #{bert_model_forward.6} parent=0 // pred_fallthru
    _
  // Predicated region
  $region22: #{bert_model_forward.6} parent=0 // pred_check
    _
  $region23: #{bert_model_forward.6} parent=0 // pred_check_branch
    %23 = sbr.rel (0) target = $region25
  $region24: #{bert_model_forward.6} parent=0 // pred_region
    _
  $region25: #{bert_model_forward.6} parent=0 // pred_fallthru
    _
  // Predicated region
  $region26: #{bert_model_forward.6} parent=0 // pred_check
    _
  $region27: #{bert_model_forward.6} parent=0 // pred_check_branch
    %25 = sbr.rel (0) target = $region29
  $region28: #{bert_model_forward.6} parent=0 // pred_region
    _
  $region29: #{bert_model_forward.6} parent=0 // pred_fallthru
    _
  %v27 = vld [vmem:[%s0] sm:$0x7]
  %v28 = vld [vmem:[%s1] sm:$0xf]
  %v29 = vld [vmem:[%s1 + $0x4] sm:$0xf]
  %v30 = vld [vmem:[%s1 + $0x8] sm:$0xf]
  %v31 = vld [vmem:[%s1 + $0xc] sm:$0xf]
  %v32 = vld [vmem:[%s2] sm:$0x1]
  %v34 = vperm.slane %v32, 0
  %v40 = vunpack.c.l.b16 %v28
  %v41 = vunpack.c.l.b16 %v29
  %v42 = vunpack.c.l.b16 %v30
  %v43 = vunpack.c.l.b16 %v31
  %v44 = vpack.c.b16 %v41, %v40
  %v45 = vpack.c.b16 %v43, %v42
  %vm48 = vcmask 261120
  %v50 = vsel %vm48, %v27, 0
  %52 = vmatpush.bf16.msra.mxu0 0
  %53 = vmatpush.bf16.msra.mxu0 0
  %54 = vmatpush.bf16.msra.mxu0 0
  %55 = vmatpush.bf16.msra.mxu0 0
  %56 = vmatpush.bf16.msra.mxu0 0
  %57 = vmatpush.bf16.msra.mxu0 0
  %58 = vmatpush.bf16.msra.mxu0 %v45
  %59 = vmatpush.bf16.msra.mxu0 %v44
  %60 = vmatmul.bf16.gmra.mxu0 %v50
  %v61 = vpop.f32.mrf.mxu0
  %v62 = vadd.f32 %v34, %v61
  %v63 = vpop.f32.mrf.mxu0
  %64 = vdwg.mxu0
  %v65 = vmax.f32 %v62, 0.0
  %v66 = vld [vmem:[%s3] sm:$0x1]
  %v67 = vld [vmem:[%s4] sm:$0x1]
  %vm68 = vcmask 259072
  %v69 = vsel %vm68, %v65, 0.0
  %70 = vadd.xlane.f32.xlu0 %v69
  %v71 = vpop.xlane.xlu0 %70
  %v72 = vrcp.pop 32.0
  %v73 = vmul.f32 32.0, %v72
  %v74 = vsub.f32 1.0, %v73
  %v75 = vmul.f32 %v72, %v74
  %v76 = vadd.f32 %v72, %v75
  %vm77 = vweird.f32 %v72
  %v78 = vsel %vm77, %v72, %v76
  %v79 = vmul.f32 %v71, %v78
  %v80 = vsub.f32 %v65, %v79
  %v81 = vmul.f32 %v80, %v80
  %v82 = vsel %vm68, %v81, 0.0
  %83 = vadd.xlane.f32.xlu0 %v82
  %v84 = vpop.xlane.xlu0 %83
  %v85 = vmul.f32 %v84, %v78
  %v86 = vadd.f32 %v85, 1e-05
  %v87 = vrsqrt.pop %v86
  %v88 = vmul.f32 %v87, %v86
  %v89 = vmul.f32 %v88, %v87
  %v90 = vmul.f32 0.5, %v89
  %v91 = vsub.f32 1.5, %v90
  %v92 = vmul.f32 %v87, %v91
  %vm93 = vweird.f32 %v86
  %vm94 = vweird.f32 %v87
  %vm95 = vmor %vm93, %vm94
  %v96 = vsel %vm95, %v87, %v92
  %v97 = vmul.f32 %v80, %v96
  %v99 = vperm.slane %v66, 0
  %v101 = vmul.f32 %v97, %v99
  %v103 = vperm.slane %v67, 0
  %v105 = vadd.f32 %v101, %v103
  %v106 = vpack.c.bf16 %v105, %v105
  %v107 = vld [vmem:[%s5] sm:$0xf]
  %v108 = vld [vmem:[%s5 + $0x4] sm:$0xf]
  %v109 = vld [vmem:[%s5 + $0x8] sm:$0xf]
  %v110 = vld [vmem:[%s5 + $0xc] sm:$0xf]
  %v111 = vld [vmem:[%s6] sm:$0x1]
  %v113 = vperm.slane %v111, 0
  %v119 = vunpack.c.l.b16 %v107
  %v120 = vunpack.c.l.b16 %v108
  %v121 = vunpack.c.l.b16 %v109
  %v122 = vunpack.c.l.b16 %v110
  %v123 = vpack.c.b16 %v120, %v119
  %v124 = vpack.c.b16 %v122, %v121
  %v128 = vsel %vm48, %v106, 0
  %130 = vmatpush.bf16.msra.mxu0 0
  %131 = vmatpush.bf16.msra.mxu0 0
  %132 = vmatpush.bf16.msra.mxu0 0
  %133 = vmatpush.bf16.msra.mxu0 0
  %134 = vmatpush.bf16.msra.mxu0 0
  %135 = vmatpush.bf16.msra.mxu0 0
  %136 = vmatpush.bf16.msra.mxu0 %v124
  %137 = vmatpush.bf16.msra.mxu0 %v123
  %138 = vmatmul.bf16.gmra.mxu0 %v128
  %v139 = vpop.f32.mrf.mxu0
  %v140 = vadd.f32 %v113, %v139
  %v141 = vpop.f32.mrf.mxu0
  %142 = vdwg.mxu0
  %143 = vst [vmem:[%s7] sm:$0x3f] %v140
  // Predicated region
  $region30: #{bert_model_forward.6} parent=0 // pred_check
    _
  $region31: #{bert_model_forward.6} parent=0 // pred_check_branch
    %145 = sbr.rel (0) target = $region33
  $region32: #{bert_model_forward.6} parent=0 // pred_region
    _
  $region33: #{bert_model_forward.6} parent=0 // pred_fallthru
    _
  // Predicated region
  $region34: #{bert_model_forward.6} parent=0 // pred_check
    _
  $region35: #{bert_model_forward.6} parent=0 // pred_check_branch
    %147 = sbr.rel (0) target = $region37
  $region36: #{bert_model_forward.6} parent=0 // pred_region
    _
  $region37: #{bert_model_forward.6} parent=0 // pred_fallthru
    _

</llo_original>
